<compile_context>
chip_gen: v6e
topology: v6e:2x2x1
jax: 0.10.0
libtpu: 0.0.40
codegen_flags: <defaults>
</compile_context>

<pallas_src>
import math
from functools import partial

import jax
import jax.numpy as jnp
from jax import lax
from jax.experimental import pallas as pl
from jax.experimental.pallas import tpu as pltpu


# ---------------------------------------------------------------------------
# Generation-aware VMEM limit
# ---------------------------------------------------------------------------

def _vmem_limit_bytes():
    """~75% of physical VMEM, capped at 100 MiB.
    v5e/v6e (128 MiB physical) -> 96 MiB; v7x (64 MiB) -> 48 MiB."""
    cap = 64 * 1024 * 1024                      # conservative fallback
    try:
        info = pltpu.get_tpu_info()
        cap = int(getattr(info, "vmem_capacity_bytes", cap)) or cap
    except Exception:
        pass
    return int(min(cap * 3 // 4, 100 * 1024 * 1024))


# ---------------------------------------------------------------------------
# Pallas multi-head attention kernel (used for self- and cross-attention)
# ---------------------------------------------------------------------------

def _mha_kernel(*refs, heads_per_group, head_dim, self_attention, compute_dtype):
    """One (head-group, batch) grid step.

    self-attention : (x_ref, mask_ref, wq_ref, bq_ref, wkv_ref, bkv_ref, out_ref)
    cross-attention: (xq_ref, xkv_ref, mask_ref, wq_ref, bq_ref, wkv_ref, bkv_ref, out_ref)

    x*_ref  : (1, S, E)      hidden states, already in compute_dtype (wrapper cast)
    mask_ref: (1, 1, S_kv)   additive attention mask, float32
    wq_ref  : (1, E, HGD)    pre-transposed Q weights (1/sqrt(Dh) folded in)
    bq_ref  : (1, 1, HGD)    float32 (scale folded in)
    wkv_ref : (1, E, 2*HGD)  pre-transposed fused [K | V] weights
    bkv_ref : (1, 1, 2*HGD)  float32
    out_ref : (1, S_q, HGD)  column slice [g*HGD:(g+1)*HGD] of (B, S_q, E)
    """
    if self_attention:
        xq_ref, mask_ref, wq_ref, bq_ref, wkv_ref, bkv_ref, out_ref = refs
    else:
        xq_ref, xkv_ref, mask_ref, wq_ref, bq_ref, wkv_ref, bkv_ref, out_ref = refs

    cdt = compute_dtype
    hg, dh = heads_per_group, head_dim
    hgd = hg * dh

    xq = xq_ref[0]                                   # (S_q, E), compute_dtype
    xkv = xq if self_attention else xkv_ref[0]       # (S_kv, E)
    mask = mask_ref[0]                               # (1, S_kv), float32

    # Lane-dense projections on the MXU; weights arrive pre-transposed (no
    # in-kernel transpose); float32 accumulation, bias adds in float32.
    q = jnp.dot(xq, wq_ref[0], preferred_element_type=jnp.float32) + bq_ref[0, 0]
    kv = (jnp.dot(xkv, wkv_ref[0], preferred_element_type=jnp.float32)
          + bkv_ref[0, 0])

    q = q.astype(cdt)                                # 1/sqrt(Dh) already in Wq/bq
    k = kv[:, :hgd].astype(cdt)
    v = kv[:, hgd:].astype(cdt)

    # EUP approximate reciprocal on the low-precision fast path only.
    approx = jnp.dtype(cdt).itemsize < 4

    # TODO(synk): for long sequences (hg * S_q * S_kv * 4B approaching VMEM)
    # switch this static unroll to lax.fori_loop + a VMEM scratch accumulator
    # (bounds per-head f32 score live ranges) and add a kv-block grid axis with
    # an online-softmax accumulator (flash-style), gated on S_kv / VMEM size.
    ctx_tiles = []
    for h in range(hg):                              # static unroll; hg is small
        sl = slice(h * dh, (h + 1) * dh)
        # scores = Q K^T via dot_general contracting last dims (no k.T)
        s = lax.dot_general(q[:, sl], k[:, sl], (((1,), (1,)), ((), ())),
                            preferred_element_type=jnp.float32)   # (S_q, S_kv)
        s = s + mask                                  # broadcast over query rows
        s = s - jnp.max(s, axis=-1, keepdims=True)    # stable softmax (float32)
        p = jnp.exp(s)
        p = p * pl.reciprocal(jnp.sum(p, axis=-1, keepdims=True), approx=approx)
        # attention dropout: eval mode -> identity; head_mask: None
        ctx_tiles.append(jnp.dot(p.astype(cdt), v[:, sl],
                                 preferred_element_type=jnp.float32))  # (S_q, dh)

    # Single lane-dense (S_q, HGD) store per grid step (no per-head masked
    # partial stores at lane offsets).
    ctx = ctx_tiles[0] if hg == 1 else jnp.concatenate(ctx_tiles, axis=-1)
    out_ref[0] = ctx.astype(out_ref.dtype)


# ---------------------------------------------------------------------------
# One-time weight preparation (parameter-load time, NOT per forward call)
# ---------------------------------------------------------------------------

def prepare_attention_params(wq, bq, wk, bk, wv, bv, num_heads, *,
                             compute_dtype=jnp.bfloat16, heads_per_group=None):
    """Transpose PyTorch (out, in) weights -> (in, out), group output columns by
    head group, fuse K|V, fold 1/sqrt(Dh) into Q weight+bias, cast matmul
    operands to the MXU compute dtype.  Returns an arrays-only dict.

    Default heads_per_group = num_heads (G == 1): the whole [Q | KV] weight set
    has a constant block index across the grid and is DMA'd exactly once
    (preferred on v5e/v6e 128 MiB VMEM; fine on v7x for moderate S).  Pass a
    smaller heads_per_group (HG*Dh a multiple of 128) for very long sequences.
    """
    E_out, E_in = wq.shape
    H = num_heads
    Dh = E_out // H
    HG = heads_per_group if heads_per_group is not None else H
    assert H % HG == 0
    G = H // HG
    HGD = HG * Dh
    scale = 1.0 / math.sqrt(Dh)

    def group_w(w, s=1.0):
        return (w.T * s).reshape(E_in, G, HGD).transpose(1, 0, 2).astype(compute_dtype)

    def group_b(b, s=1.0):
        return (b * s).reshape(G, 1, HGD).astype(jnp.float32)

    return {
        "wq": group_w(wq, scale),                                        # (G, E, HGD)
        "bq": group_b(bq, scale),                                        # (G, 1, HGD)
        "wkv": jnp.concatenate([group_w(wk), group_w(wv)], axis=-1),     # (G, E, 2*HGD)
        "bkv": jnp.concatenate([group_b(bk), group_b(bv)], axis=-1),     # (G, 1, 2*HGD)
    }


# ---------------------------------------------------------------------------
# Attention wrapper (pallas_call)
# ---------------------------------------------------------------------------

def multi_head_attention(xq, xkv, add_mask, prep, num_heads):
    """BertSelfAttention forward (eval mode, absolute position embeddings).

    xq:  (B, S_q, E)  query-side hidden states
    xkv: (B, S_kv, E) key/value hidden states (pass the SAME object as xq for
                      self-attention: the duplicate DMA is then elided)
    add_mask: (B, S_kv) additive float mask over key positions
    prep: dict from prepare_attention_params (arrays only)
    Returns (B, S_q, E) == torch `context_layer` (heads already merged).
    """
    B, S_q, E = xq.shape
    self_attn = xq is xkv
    _, S_kv, Ekv = xkv.shape
    assert Ekv == E, "query and key/value hidden sizes must match"

    wq_g, bq_g, wkv_g, bkv_g = prep["wq"], prep["bq"], prep["wkv"], prep["bkv"]
    G, _, HGD = wq_g.shape
    H = num_heads
    Dh = (G * HGD) // H
    HG = HGD // Dh
    cdt = wq_g.dtype
    out_dtype = xq.dtype

    # Cast activations to the MXU compute dtype ONCE (wrapper side): halves the
    # HBM->VMEM DMA bytes of the biggest blocks and removes the per-step cast.
    xq_c = xq.astype(cdt)
    xkv_c = xq_c if self_attn else xkv.astype(cdt)
    mask = add_mask.reshape(B, 1, S_kv).astype(jnp.float32)

    kernel = partial(_mha_kernel, heads_per_group=HG, head_dim=Dh,
                     self_attention=self_attn, compute_dtype=cdt)

    # Grid / index maps.  G == 1: weight block indices are constant -> weights
    # DMA'd once for the whole grid.  G > 1: head-group axis OUTERMOST so each
    # weight group is fetched once (not once per batch).
    if G == 1:
        grid = (B,)
        batch_map = lambda b: (b, 0, 0)
        weight_map = lambda b: (0, 0, 0)
        out_map = lambda b: (b, 0, 0)
        dim_sem = ("parallel",)
    else:
        grid = (G, B)
        batch_map = lambda g, b: (b, 0, 0)
        weight_map = lambda g, b: (g, 0, 0)
        out_map = lambda g, b: (b, 0, g)
        dim_sem = ("parallel", "parallel")

    in_specs = [pl.BlockSpec((1, S_q, E), batch_map)]
    inputs = [xq_c]
    if not self_attn:
        in_specs.append(pl.BlockSpec((1, S_kv, E), batch_map))
        inputs.append(xkv_c)
    in_specs += [
        pl.BlockSpec((1, 1, S_kv), batch_map),
        pl.BlockSpec((1, E, HGD), weight_map),
        pl.BlockSpec((1, 1, HGD), weight_map),
        pl.BlockSpec((1, E, 2 * HGD), weight_map),
        pl.BlockSpec((1, 1, 2 * HGD), weight_map),
    ]
    inputs += [mask, wq_g, bq_g, wkv_g, bkv_g]

    # Cost estimate consistent with the raster above (weights read once; hidden
    # blocks re-read once per head group when G > 1).
    cdt_bytes = jnp.dtype(cdt).itemsize
    flops = (2 * B * S_q * E * E                 # Q projection
             + 4 * B * S_kv * E * E              # fused K/V projection
             + 4 * B * H * S_q * S_kv * Dh)      # QK^T + probs @ V
    transcendentals = B * H * S_q * (S_kv + 1)   # exp + reciprocal
    act_bytes = B * S_q * E * cdt_bytes * G
    if not self_attn:
        act_bytes += B * S_kv * E * cdt_bytes * G
    bytes_accessed = (act_bytes
                      + B * S_kv * 4 * G
                      + (wq_g.size + wkv_g.size) * cdt_bytes
                      + (bq_g.size + bkv_g.size) * 4
                      + B * S_q * E * jnp.dtype(out_dtype).itemsize)

    # TODO(synk): optional fp8 weight quantization of wq/wkv on v7x (MXU fp8
    # path) behind an accuracy gate; not applicable to v5e/v6e.
    return pl.pallas_call(
        kernel,
        out_shape=jax.ShapeDtypeStruct((B, S_q, E), out_dtype),
        grid=grid,
        in_specs=in_specs,
        # Each head group writes straight into its lane-dense column slice of E:
        # output is produced directly in (B, S, E) layout, no head-merge transpose.
        out_specs=pl.BlockSpec((1, S_q, HGD), out_map),
        compiler_params=pltpu.CompilerParams(
            dimension_semantics=dim_sem,
            vmem_limit_bytes=_vmem_limit_bytes()),
        cost_estimate=pl.CostEstimate(flops=int(flops),
                                      transcendentals=int(transcendentals),
                                      bytes_accessed=int(bytes_accessed)),
    )(*inputs)


# ---------------------------------------------------------------------------
# Plain-JAX glue for the rest of BertCrossLayer (dense / LayerNorm / gelu)
# ---------------------------------------------------------------------------

def _dense(x, w, b):
    """PyTorch nn.Linear: y = x @ W^T + b, W is (out_features, in_features)."""
    return jnp.einsum("...i,oi->...o", x, w) + b


def _layer_norm(x, gamma, beta, eps=1e-12):
    mu = jnp.mean(x, axis=-1, keepdims=True)
    var = jnp.mean(jnp.square(x - mu), axis=-1, keepdims=True)
    return (x - mu) * lax.rsqrt(var + eps) * gamma + beta


def _gelu(x):
    """Exact erf-based gelu, as in the reference module."""
    return x * 0.5 * (1.0 + lax.erf(x / math.sqrt(2.0)))


def _pallas_attn(xq, xkv, add_mask, p, which, *, num_heads):
    return multi_head_attention(xq, xkv, add_mask, p[which + "_attn"], num_heads)


def _ref_attn(xq, xkv, add_mask, p, which, *, num_heads):
    w = lambda n: p[which + "_" + n]
    return _attention_ref(xq, xkv, add_mask, w("wq"), w("bq"), w("wk"), w("bk"),
                          w("wv"), w("bv"), num_heads)


def _bert_cross_layer(x, kv, q_add, kv_add, p, attn):
    """BertCrossLayer.forward (eval mode, graph_sprels=None)."""
    # --- self-attention block (query stream, q mask); xq is xkv -> single DMA ---
    sa = attn(x, x, q_add, p, "sa")
    x = _layer_norm(_dense(sa, p["sa_wo"], p["sa_bo"]) + x,
                    p["ln1_g"], p["ln1_b"])
    # --- cross-attention block: queries = x, keys/values = kv, kv mask ---
    ca = attn(x, kv, kv_add, p, "ca")
    x = _layer_norm(_dense(ca, p["ca_wo"], p["ca_bo"]) + x,
                    p["ln2_g"], p["ln2_b"])
    # --- feed-forward block (BertIntermediate + BertOutput) ---
    inter = _gelu(_dense(x, p["ff_w1"], p["ff_b1"]))
    x = _layer_norm(_dense(inter, p["ff_w2"], p["ff_b2"]) + x,
                    p["ln3_g"], p["ln3_b"])
    return x


def crossmodal_encoder(q_embeds, q_masks, kv_embeds, kv_masks, layer_params, attn):
    """CrossmodalEncoder.forward (eval mode): extend_neg_masks + layer stack.
    q_masks / kv_masks are (B, S) 0/1 masks over key positions."""
    # TODO(synk): optional graph_sprels additive bias on the self-attention mask
    # is not supported (callers pass None, the default).
    q_add = (1.0 - q_masks.astype(jnp.float32)) * -10000.0
    kv_add = (1.0 - kv_masks.astype(jnp.float32)) * -10000.0
    x = q_embeds
    for p in layer_params:
        x = _bert_cross_layer(x, kv_embeds, q_add, kv_add, p, attn)
    return x


# ---------------------------------------------------------------------------
# Pure-JAX reference attention (mirrors torch BertSelfAttention exactly)
# ---------------------------------------------------------------------------

def _attention_ref(xq, xkv, add_mask, wq, bq, wk, bk, wv, bv, num_heads):
    B, S_q, E = xq.shape
    H = num_heads
    Dh = E // H

    def proj(x, w, b):
        y = jnp.einsum("bse,oe->bso", x, w) + b
        return y.reshape(x.shape[0], x.shape[1], H, Dh).transpose(0, 2, 1, 3)

    q = proj(xq, wq, bq)
    k = proj(xkv, wk, bk)
    v = proj(xkv, wv, bv)
    scores = jnp.einsum("bhqd,bhkd->bhqk", q, k) / math.sqrt(Dh)
    scores = scores + add_mask[:, None, None, :]
    probs = jax.nn.softmax(scores, axis=-1)
    ctx = jnp.einsum("bhqk,bhkd->bhqd", probs, v)
    return ctx.transpose(0, 2, 1, 3).reshape(B, S_q, E)


# ---------------------------------------------------------------------------
# Deterministic parameter construction + one-time prep
# ---------------------------------------------------------------------------

def _init_linear(key, out_dim, in_dim):
    kw, kb = jax.random.split(key)
    w = jax.random.normal(kw, (out_dim, in_dim), jnp.float32) / math.sqrt(in_dim)
    b = 0.1 * jax.random.normal(kb, (out_dim,), jnp.float32)
    return w, b


def _init_layer(key, hidden, intermediate):
    ks = jax.random.split(key, 13)
    p = {}
    p["sa_wq"], p["sa_bq"] = _init_linear(ks[0], hidden, hidden)
    p["sa_wk"], p["sa_bk"] = _init_linear(ks[1], hidden, hidden)
    p["sa_wv"], p["sa_bv"] = _init_linear(ks[2], hidden, hidden)
    p["sa_wo"], p["sa_bo"] = _init_linear(ks[3], hidden, hidden)
    p["ca_wq"], p["ca_bq"] = _init_linear(ks[4], hidden, hidden)
    p["ca_wk"], p["ca_bk"] = _init_linear(ks[5], hidden, hidden)
    p["ca_wv"], p["ca_bv"] = _init_linear(ks[6], hidden, hidden)
    p["ca_wo"], p["ca_bo"] = _init_linear(ks[7], hidden, hidden)
    p["ff_w1"], p["ff_b1"] = _init_linear(ks[8], intermediate, hidden)
    p["ff_w2"], p["ff_b2"] = _init_linear(ks[9], hidden, intermediate)
    for i, name in enumerate(("ln1", "ln2", "ln3")):
        kg, kb = jax.random.split(ks[10 + i])
        p[name + "_g"] = 1.0 + 0.1 * jax.random.normal(kg, (hidden,), jnp.float32)
        p[name + "_b"] = 0.1 * jax.random.normal(kb, (hidden,), jnp.float32)
    return p


def prepare_layer_params(p, num_heads, *, compute_dtype=jnp.bfloat16,
                         heads_per_group=None):
    """One-time (load-time) weight prep for a BertCrossLayer's two attentions."""
    p = dict(p)
    p["sa_attn"] = prepare_attention_params(
        p["sa_wq"], p["sa_bq"], p["sa_wk"], p["sa_bk"], p["sa_wv"], p["sa_bv"],
        num_heads, compute_dtype=compute_dtype, heads_per_group=heads_per_group)
    p["ca_attn"] = prepare_attention_params(
        p["ca_wq"], p["ca_bq"], p["ca_wk"], p["ca_bk"], p["ca_wv"], p["ca_bv"],
        num_heads, compute_dtype=compute_dtype, heads_per_group=heads_per_group)
    return p


if __name__ == "__main__":
    # ---- full CrossmodalEncoder forward at small shapes --------------------
    B, S_q, S_kv, E, H, I_FF, L = 2, 8, 16, 32, 4, 64, 2

    root = jax.random.PRNGKey(0)
    k_q, k_kv, k_layers, k_grp = jax.random.split(root, 4)

    q_embeds = jax.random.normal(k_q, (B, S_q, E), jnp.float32)
    kv_embeds = jax.random.normal(k_kv, (B, S_kv, E), jnp.float32)
    q_masks = jnp.ones((B, S_q), jnp.float32).at[1, -2:].set(0.0)
    kv_masks = jnp.ones((B, S_kv), jnp.float32).at[1, -3:].set(0.0)
    params_raw = [_init_layer(k, E, I_FF) for k in jax.random.split(k_layers, L)]

    def make_runner(compute_dtype):
        # weight prep happens ONCE here (load time), outside the jitted forward
        prepped = [prepare_layer_params(p, H, compute_dtype=compute_dtype)
                   for p in params_raw]
        attn = partial(_pallas_attn, num_heads=H)

        def run(qe, qm, ke, km, ps):
            return crossmodal_encoder(qe, qm, ke, km, ps, attn)

        return jax.jit(run), prepped

    run_bf16, prepped_bf16 = make_runner(jnp.bfloat16)
    run_f32, prepped_f32 = make_runner(jnp.float32)

    out_bf16 = jax.block_until_ready(
        run_bf16(q_embeds, q_masks, kv_embeds, kv_masks, prepped_bf16))
    out_f32 = jax.block_until_ready(
        run_f32(q_embeds, q_masks, kv_embeds, kv_masks, prepped_f32))

    ref = crossmodal_encoder(q_embeds, q_masks, kv_embeds, kv_masks, params_raw,
                             partial(_ref_attn, num_heads=H))
    ref = jax.block_until_ready(ref)

    assert out_bf16.shape == (B, S_q, E)
    assert jnp.allclose(out_f32, ref, atol=2e-3, rtol=2e-3), \
        "f32 Pallas encoder mismatch vs reference"
    # NOTE: bf16 path uses the EUP approximate reciprocal (softmax rows sum to
    # ~1 +/- 2^-12); within the bf16 tolerance below.
    assert jnp.allclose(out_bf16, ref, atol=5e-2, rtol=5e-2), \
        "bf16 Pallas encoder mismatch vs reference"

    # ---- grouped-head attention path (HG*Dh = 128 lanes, G > 1, g-outer grid) ----
    B2, S2, E2, H2 = 2, 16, 256, 4            # Dh = 64, 2 heads/group -> 128 lanes
    kk = jax.random.split(k_grp, 5)
    xq2 = jax.random.normal(kk[0], (B2, S2, E2), jnp.float32)
    xkv2 = jax.random.normal(kk[1], (B2, S2, E2), jnp.float32)
    m2 = jnp.zeros((B2, S2), jnp.float32).at[0, -4:].set(-10000.0)  # additive
    wq2, bq2 = _init_linear(kk[2], E2, E2)
    wk2, bk2 = _init_linear(kk[3], E2, E2)
    wv2, bv2 = _init_linear(kk[4], E2, E2)

    prep2 = prepare_attention_params(wq2, bq2, wk2, bk2, wv2, bv2, H2,
                                     compute_dtype=jnp.float32, heads_per_group=2)
    grouped = jax.jit(
        lambda xq, xkv, m, prep: multi_head_attention(xq, xkv, m, prep, H2))
    out2 = jax.block_until_ready(grouped(xq2, xkv2, m2, prep2))
    ref2 = _attention_ref(xq2, xkv2, m2, wq2, bq2, wk2, bk2, wv2, bv2, H2)
    assert jnp.allclose(out2, ref2, atol=2e-3, rtol=2e-3), \
        "grouped-head attention mismatch vs reference"

    print("KERNEL_OK")
</pallas_src>

<mosaic_0001>
module attributes {stable_mosaic.version = 11 : i64} {
  func.func @_mha_kernel(%arg0: i32, %arg1: memref<1x8x32xbf16, #tpu.memory_space<vmem>>, %arg2: memref<1x1x8xf32, #tpu.memory_space<vmem>>, %arg3: memref<1x32x32xbf16, #tpu.memory_space<vmem>>, %arg4: memref<1x1x32xf32, #tpu.memory_space<vmem>>, %arg5: memref<1x32x64xbf16, #tpu.memory_space<vmem>>, %arg6: memref<1x1x64xf32, #tpu.memory_space<vmem>>, %arg7: memref<1x8x32xf32, #tpu.memory_space<vmem>>) attributes {dimension_semantics = [#tpu.dimension_semantics<parallel>], iteration_bounds = array<i64: 2>, scalar_prefetch = 0 : i64, scratch_operands = 0 : i64, tpu.core_type = #tpu.core_type<tc>, window_params = [{transform_indices = @transform_0, window_bounds = array<i64: 1, 8, 32>}, {transform_indices = @transform_1, window_bounds = array<i64: 1, 1, 8>}, {pipeline_mode = #tpu.pipeline_mode<synchronous>, transform_indices = @transform_2, window_bounds = array<i64: 1, 32, 32>}, {pipeline_mode = #tpu.pipeline_mode<synchronous>, transform_indices = @transform_3, window_bounds = array<i64: 1, 1, 32>}, {pipeline_mode = #tpu.pipeline_mode<synchronous>, transform_indices = @transform_4, window_bounds = array<i64: 1, 32, 64>}, {pipeline_mode = #tpu.pipeline_mode<synchronous>, transform_indices = @transform_5, window_bounds = array<i64: 1, 1, 64>}, {transform_indices = @transform_6, window_bounds = array<i64: 1, 8, 32>}]} {
    %c0 = arith.constant 0 : index
    %c0_0 = arith.constant 0 : index
    %c0_1 = arith.constant 0 : index
    %0 = vector.load %arg1[%c0, %c0_0, %c0_1] : memref<1x8x32xbf16, #tpu.memory_space<vmem>>, vector<1x8x32xbf16>
    %1 = vector.shape_cast %0 : vector<1x8x32xbf16> to vector<8x32xbf16>
    %c0_2 = arith.constant 0 : index
    %c0_3 = arith.constant 0 : index
    %c0_4 = arith.constant 0 : index
    %2 = vector.load %arg2[%c0_2, %c0_3, %c0_4] : memref<1x1x8xf32, #tpu.memory_space<vmem>>, vector<1x1x8xf32>
    %3 = vector.shape_cast %2 : vector<1x1x8xf32> to vector<1x8xf32>
    %c0_5 = arith.constant 0 : index
    %c0_6 = arith.constant 0 : index
    %c0_7 = arith.constant 0 : index
    %4 = vector.load %arg3[%c0_5, %c0_6, %c0_7] : memref<1x32x32xbf16, #tpu.memory_space<vmem>>, vector<1x32x32xbf16>
    %5 = vector.shape_cast %4 : vector<1x32x32xbf16> to vector<32x32xbf16>
    %cst = arith.constant dense<0.000000e+00> : vector<8x32xf32>
    %6 = tpu.matmul %1, %5, %cst {dimension_numbers = #tpu.dot_dimension_numbers<[1], [0], [0], [1], [0, 0, 1, 1], [], []>} : vector<8x32xbf16>, vector<32x32xbf16>, vector<8x32xf32> -> vector<8x32xf32>
    %c0_8 = arith.constant 0 : index
    %c0_9 = arith.constant 0 : index
    %c0_10 = arith.constant 0 : index
    %7 = vector.load %arg4[%c0_8, %c0_9, %c0_10] : memref<1x1x32xf32, #tpu.memory_space<vmem>>, vector<1x1x32xf32>
    %8 = vector.shape_cast %7 : vector<1x1x32xf32> to vector<32xf32>
    %9 = vector.shape_cast %8 : vector<32xf32> to vector<1x32xf32>
    %10 = vector.broadcast %9 : vector<1x32xf32> to vector<8x32xf32>
    %11 = arith.addf %6, %10 : vector<8x32xf32>
    %c0_11 = arith.constant 0 : index
    %c0_12 = arith.constant 0 : index
    %c0_13 = arith.constant 0 : index
    %12 = vector.load %arg5[%c0_11, %c0_12, %c0_13] : memref<1x32x64xbf16, #tpu.memory_space<vmem>>, vector<1x32x64xbf16>
    %13 = vector.shape_cast %12 : vector<1x32x64xbf16> to vector<32x64xbf16>
    %cst_14 = arith.constant dense<0.000000e+00> : vector<8x64xf32>
    %14 = tpu.matmul %1, %13, %cst_14 {dimension_numbers = #tpu.dot_dimension_numbers<[1], [0], [0], [1], [0, 0, 1, 1], [], []>} : vector<8x32xbf16>, vector<32x64xbf16>, vector<8x64xf32> -> vector<8x64xf32>
    %c0_15 = arith.constant 0 : index
    %c0_16 = arith.constant 0 : index
    %c0_17 = arith.constant 0 : index
    %15 = vector.load %arg6[%c0_15, %c0_16, %c0_17] : memref<1x1x64xf32, #tpu.memory_space<vmem>>, vector<1x1x64xf32>
    %16 = vector.shape_cast %15 : vector<1x1x64xf32> to vector<64xf32>
    %17 = vector.shape_cast %16 : vector<64xf32> to vector<1x64xf32>
    %18 = vector.broadcast %17 : vector<1x64xf32> to vector<8x64xf32>
    %19 = arith.addf %14, %18 : vector<8x64xf32>
    %20 = arith.truncf %11 : vector<8x32xf32> to vector<8x32xbf16>
    %21 = vector.extract_strided_slice %19 {offsets = [0, 0], sizes = [8, 32], strides = [1, 1]} : vector<8x64xf32> to vector<8x32xf32>
    %22 = arith.truncf %21 : vector<8x32xf32> to vector<8x32xbf16>
    %23 = vector.extract_strided_slice %19 {offsets = [0, 32], sizes = [8, 32], strides = [1, 1]} : vector<8x64xf32> to vector<8x32xf32>
    %24 = arith.truncf %23 : vector<8x32xf32> to vector<8x32xbf16>
    %25 = vector.extract_strided_slice %20 {offsets = [0, 0], sizes = [8, 8], strides = [1, 1]} : vector<8x32xbf16> to vector<8x8xbf16>
    %26 = vector.extract_strided_slice %22 {offsets = [0, 0], sizes = [8, 8], strides = [1, 1]} : vector<8x32xbf16> to vector<8x8xbf16>
    %cst_18 = arith.constant dense<0.000000e+00> : vector<8x8xf32>
    %27 = tpu.matmul %25, %26, %cst_18 {dimension_numbers = #tpu.dot_dimension_numbers<[1], [1], [0], [0], [0, 0, 1, 0], [], []>} : vector<8x8xbf16>, vector<8x8xbf16>, vector<8x8xf32> -> vector<8x8xf32>
    %28 = vector.broadcast %3 : vector<1x8xf32> to vector<8x8xf32>
    %29 = arith.addf %27, %28 : vector<8x8xf32>
    %cst_19 = arith.constant dense<0xFF800000> : vector<8xf32>
    %30 = vector.multi_reduction <maximumf>, %29, %cst_19 [1] : vector<8x8xf32> to vector<8xf32>
    %31 = vector.shape_cast %30 : vector<8xf32> to vector<8x1xf32>
    %32 = vector.broadcast %31 : vector<8x1xf32> to vector<8x8xf32>
    %33 = arith.subf %29, %32 : vector<8x8xf32>
    %34 = math.exp %33 : vector<8x8xf32>
    %cst_20 = arith.constant dense<0.000000e+00> : vector<8xf32>
    %35 = vector.multi_reduction <add>, %34, %cst_20 [1] : vector<8x8xf32> to vector<8xf32>
    %36 = vector.shape_cast %35 : vector<8xf32> to vector<8x1xf32>
    %37 = tpu.reciprocal %36 {approx = true} : vector<8x1xf32> -> vector<8x1xf32>
    %38 = vector.broadcast %37 : vector<8x1xf32> to vector<8x8xf32>
    %39 = arith.mulf %34, %38 : vector<8x8xf32>
    %40 = arith.truncf %39 : vector<8x8xf32> to vector<8x8xbf16>
    %41 = vector.extract_strided_slice %24 {offsets = [0, 0], sizes = [8, 8], strides = [1, 1]} : vector<8x32xbf16> to vector<8x8xbf16>
    %cst_21 = arith.constant dense<0.000000e+00> : vector<8x8xf32>
    %42 = tpu.matmul %40, %41, %cst_21 {dimension_numbers = #tpu.dot_dimension_numbers<[1], [0], [0], [1], [0, 0, 1, 1], [], []>} : vector<8x8xbf16>, vector<8x8xbf16>, vector<8x8xf32> -> vector<8x8xf32>
    %43 = vector.extract_strided_slice %20 {offsets = [0, 8], sizes = [8, 8], strides = [1, 1]} : vector<8x32xbf16> to vector<8x8xbf16>
    %44 = vector.extract_strided_slice %22 {offsets = [0, 8], sizes = [8, 8], strides = [1, 1]} : vector<8x32xbf16> to vector<8x8xbf16>
    %cst_22 = arith.constant dense<0.000000e+00> : vector<8x8xf32>
    %45 = tpu.matmul %43, %44, %cst_22 {dimension_numbers = #tpu.dot_dimension_numbers<[1], [1], [0], [0], [0, 0, 1, 0], [], []>} : vector<8x8xbf16>, vector<8x8xbf16>, vector<8x8xf32> -> vector<8x8xf32>
    %46 = vector.broadcast %3 : vector<1x8xf32> to vector<8x8xf32>
    %47 = arith.addf %45, %46 : vector<8x8xf32>
    %cst_23 = arith.constant dense<0xFF800000> : vector<8xf32>
    %48 = vector.multi_reduction <maximumf>, %47, %cst_23 [1] : vector<8x8xf32> to vector<8xf32>
    %49 = vector.shape_cast %48 : vector<8xf32> to vector<8x1xf32>
    %50 = vector.broadcast %49 : vector<8x1xf32> to vector<8x8xf32>
    %51 = arith.subf %47, %50 : vector<8x8xf32>
    %52 = math.exp %51 : vector<8x8xf32>
    %cst_24 = arith.constant dense<0.000000e+00> : vector<8xf32>
    %53 = vector.multi_reduction <add>, %52, %cst_24 [1] : vector<8x8xf32> to vector<8xf32>
    %54 = vector.shape_cast %53 : vector<8xf32> to vector<8x1xf32>
    %55 = tpu.reciprocal %54 {approx = true} : vector<8x1xf32> -> vector<8x1xf32>
    %56 = vector.broadcast %55 : vector<8x1xf32> to vector<8x8xf32>
    %57 = arith.mulf %52, %56 : vector<8x8xf32>
    %58 = arith.truncf %57 : vector<8x8xf32> to vector<8x8xbf16>
    %59 = vector.extract_strided_slice %24 {offsets = [0, 8], sizes = [8, 8], strides = [1, 1]} : vector<8x32xbf16> to vector<8x8xbf16>
    %cst_25 = arith.constant dense<0.000000e+00> : vector<8x8xf32>
    %60 = tpu.matmul %58, %59, %cst_25 {dimension_numbers = #tpu.dot_dimension_numbers<[1], [0], [0], [1], [0, 0, 1, 1], [], []>} : vector<8x8xbf16>, vector<8x8xbf16>, vector<8x8xf32> -> vector<8x8xf32>
    %61 = vector.extract_strided_slice %20 {offsets = [0, 16], sizes = [8, 8], strides = [1, 1]} : vector<8x32xbf16> to vector<8x8xbf16>
    %62 = vector.extract_strided_slice %22 {offsets = [0, 16], sizes = [8, 8], strides = [1, 1]} : vector<8x32xbf16> to vector<8x8xbf16>
    %cst_26 = arith.constant dense<0.000000e+00> : vector<8x8xf32>
    %63 = tpu.matmul %61, %62, %cst_26 {dimension_numbers = #tpu.dot_dimension_numbers<[1], [1], [0], [0], [0, 0, 1, 0], [], []>} : vector<8x8xbf16>, vector<8x8xbf16>, vector<8x8xf32> -> vector<8x8xf32>
    %64 = vector.broadcast %3 : vector<1x8xf32> to vector<8x8xf32>
    %65 = arith.addf %63, %64 : vector<8x8xf32>
    %cst_27 = arith.constant dense<0xFF800000> : vector<8xf32>
    %66 = vector.multi_reduction <maximumf>, %65, %cst_27 [1] : vector<8x8xf32> to vector<8xf32>
    %67 = vector.shape_cast %66 : vector<8xf32> to vector<8x1xf32>
    %68 = vector.broadcast %67 : vector<8x1xf32> to vector<8x8xf32>
    %69 = arith.subf %65, %68 : vector<8x8xf32>
    %70 = math.exp %69 : vector<8x8xf32>
    %cst_28 = arith.constant dense<0.000000e+00> : vector<8xf32>
    %71 = vector.multi_reduction <add>, %70, %cst_28 [1] : vector<8x8xf32> to vector<8xf32>
    %72 = vector.shape_cast %71 : vector<8xf32> to vector<8x1xf32>
    %73 = tpu.reciprocal %72 {approx = true} : vector<8x1xf32> -> vector<8x1xf32>
    %74 = vector.broadcast %73 : vector<8x1xf32> to vector<8x8xf32>
    %75 = arith.mulf %70, %74 : vector<8x8xf32>
    %76 = arith.truncf %75 : vector<8x8xf32> to vector<8x8xbf16>
    %77 = vector.extract_strided_slice %24 {offsets = [0, 16], sizes = [8, 8], strides = [1, 1]} : vector<8x32xbf16> to vector<8x8xbf16>
    %cst_29 = arith.constant dense<0.000000e+00> : vector<8x8xf32>
    %78 = tpu.matmul %76, %77, %cst_29 {dimension_numbers = #tpu.dot_dimension_numbers<[1], [0], [0], [1], [0, 0, 1, 1], [], []>} : vector<8x8xbf16>, vector<8x8xbf16>, vector<8x8xf32> -> vector<8x8xf32>
    %79 = vector.extract_strided_slice %20 {offsets = [0, 24], sizes = [8, 8], strides = [1, 1]} : vector<8x32xbf16> to vector<8x8xbf16>
    %80 = vector.extract_strided_slice %22 {offsets = [0, 24], sizes = [8, 8], strides = [1, 1]} : vector<8x32xbf16> to vector<8x8xbf16>
    %cst_30 = arith.constant dense<0.000000e+00> : vector<8x8xf32>
    %81 = tpu.matmul %79, %80, %cst_30 {dimension_numbers = #tpu.dot_dimension_numbers<[1], [1], [0], [0], [0, 0, 1, 0], [], []>} : vector<8x8xbf16>, vector<8x8xbf16>, vector<8x8xf32> -> vector<8x8xf32>
    %82 = vector.broadcast %3 : vector<1x8xf32> to vector<8x8xf32>
    %83 = arith.addf %81, %82 : vector<8x8xf32>
    %cst_31 = arith.constant dense<0xFF800000> : vector<8xf32>
    %84 = vector.multi_reduction <maximumf>, %83, %cst_31 [1] : vector<8x8xf32> to vector<8xf32>
    %85 = vector.shape_cast %84 : vector<8xf32> to vector<8x1xf32>
    %86 = vector.broadcast %85 : vector<8x1xf32> to vector<8x8xf32>
    %87 = arith.subf %83, %86 : vector<8x8xf32>
    %88 = math.exp %87 : vector<8x8xf32>
    %cst_32 = arith.constant dense<0.000000e+00> : vector<8xf32>
    %89 = vector.multi_reduction <add>, %88, %cst_32 [1] : vector<8x8xf32> to vector<8xf32>
    %90 = vector.shape_cast %89 : vector<8xf32> to vector<8x1xf32>
    %91 = tpu.reciprocal %90 {approx = true} : vector<8x1xf32> -> vector<8x1xf32>
    %92 = vector.broadcast %91 : vector<8x1xf32> to vector<8x8xf32>
    %93 = arith.mulf %88, %92 : vector<8x8xf32>
    %94 = arith.truncf %93 : vector<8x8xf32> to vector<8x8xbf16>
    %95 = vector.extract_strided_slice %24 {offsets = [0, 24], sizes = [8, 8], strides = [1, 1]} : vector<8x32xbf16> to vector<8x8xbf16>
    %cst_33 = arith.constant dense<0.000000e+00> : vector<8x8xf32>
    %96 = tpu.matmul %94, %95, %cst_33 {dimension_numbers = #tpu.dot_dimension_numbers<[1], [0], [0], [1], [0, 0, 1, 1], [], []>} : vector<8x8xbf16>, vector<8x8xbf16>, vector<8x8xf32> -> vector<8x8xf32>
    %97 = tpu.concatenate %42, %60, %78, %96 in 1 : vector<8x8xf32>, vector<8x8xf32>, vector<8x8xf32>, vector<8x8xf32> -> vector<8x32xf32>
    %c0_34 = arith.constant 0 : index
    %c0_35 = arith.constant 0 : index
    %c0_36 = arith.constant 0 : index
    %98 = vector.load %arg7[%c0_34, %c0_35, %c0_36] : memref<1x8x32xf32, #tpu.memory_space<vmem>>, vector<1x8x32xf32>
    %99 = vector.shape_cast %98 : vector<1x8x32xf32> to vector<8x32xf32>
    %100 = vector.shape_cast %97 : vector<8x32xf32> to vector<1x8x32xf32>
    tpu.vector_store %arg7[%c0_34, %c0_35, %c0_36], %100 {strides = array<i32>} : memref<1x8x32xf32, #tpu.memory_space<vmem>>, vector<1x8x32xf32>,
    return
  }
  func.func @transform_0(%arg0: i32) -> (i32, i32, i32) {
    %c0_i32 = arith.constant 0 : i32
    %c0_i32_0 = arith.constant 0 : i32
    %c0_i32_1 = arith.constant 0 : i32
    return %arg0, %c0_i32, %c0_i32_0 : i32, i32, i32
  }
  func.func @transform_1(%arg0: i32) -> (i32, i32, i32) {
    %c0_i32 = arith.constant 0 : i32
    %c0_i32_0 = arith.constant 0 : i32
    %c0_i32_1 = arith.constant 0 : i32
    return %arg0, %c0_i32, %c0_i32_0 : i32, i32, i32
  }
  func.func @transform_2(%arg0: i32) -> (i32, i32, i32) {
    %c0_i32 = arith.constant 0 : i32
    %c0_i32_0 = arith.constant 0 : i32
    %c0_i32_1 = arith.constant 0 : i32
    %c0_i32_2 = arith.constant 0 : i32
    return %c0_i32, %c0_i32_0, %c0_i32_1 : i32, i32, i32
  }
  func.func @transform_3(%arg0: i32) -> (i32, i32, i32) {
    %c0_i32 = arith.constant 0 : i32
    %c0_i32_0 = arith.constant 0 : i32
    %c0_i32_1 = arith.constant 0 : i32
    %c0_i32_2 = arith.constant 0 : i32
    return %c0_i32, %c0_i32_0, %c0_i32_1 : i32, i32, i32
  }
  func.func @transform_4(%arg0: i32) -> (i32, i32, i32) {
    %c0_i32 = arith.constant 0 : i32
    %c0_i32_0 = arith.constant 0 : i32
    %c0_i32_1 = arith.constant 0 : i32
    %c0_i32_2 = arith.constant 0 : i32
    return %c0_i32, %c0_i32_0, %c0_i32_1 : i32, i32, i32
  }
  func.func @transform_5(%arg0: i32) -> (i32, i32, i32) {
    %c0_i32 = arith.constant 0 : i32
    %c0_i32_0 = arith.constant 0 : i32
    %c0_i32_1 = arith.constant 0 : i32
    %c0_i32_2 = arith.constant 0 : i32
    return %c0_i32, %c0_i32_0, %c0_i32_1 : i32, i32, i32
  }
  func.func @transform_6(%arg0: i32) -> (i32, i32, i32) {
    %c0_i32 = arith.constant 0 : i32
    %c0_i32_0 = arith.constant 0 : i32
    %c0_i32_1 = arith.constant 0 : i32
    return %arg0, %c0_i32, %c0_i32_0 : i32, i32, i32
  }
}

module attributes {stable_mosaic.version = 11 : i64} {
  func.func @_mha_kernel(%arg0: i32, %arg1: memref<1x8x32xbf16, #tpu.memory_space<vmem>>, %arg2: memref<1x16x32xbf16, #tpu.memory_space<vmem>>, %arg3: memref<1x1x16xf32, #tpu.memory_space<vmem>>, %arg4: memref<1x32x32xbf16, #tpu.memory_space<vmem>>, %arg5: memref<1x1x32xf32, #tpu.memory_space<vmem>>, %arg6: memref<1x32x64xbf16, #tpu.memory_space<vmem>>, %arg7: memref<1x1x64xf32, #tpu.memory_space<vmem>>, %arg8: memref<1x8x32xf32, #tpu.memory_space<vmem>>) attributes {dimension_semantics = [#tpu.dimension_semantics<parallel>], iteration_bounds = array<i64: 2>, scalar_prefetch = 0 : i64, scratch_operands = 0 : i64, tpu.core_type = #tpu.core_type<tc>, window_params = [{transform_indices = @transform_0, window_bounds = array<i64: 1, 8, 32>}, {transform_indices = @transform_1, window_bounds = array<i64: 1, 16, 32>}, {transform_indices = @transform_2, window_bounds = array<i64: 1, 1, 16>}, {pipeline_mode = #tpu.pipeline_mode<synchronous>, transform_indices = @transform_3, window_bounds = array<i64: 1, 32, 32>}, {pipeline_mode = #tpu.pipeline_mode<synchronous>, transform_indices = @transform_4, window_bounds = array<i64: 1, 1, 32>}, {pipeline_mode = #tpu.pipeline_mode<synchronous>, transform_indices = @transform_5, window_bounds = array<i64: 1, 32, 64>}, {pipeline_mode = #tpu.pipeline_mode<synchronous>, transform_indices = @transform_6, window_bounds = array<i64: 1, 1, 64>}, {transform_indices = @transform_7, window_bounds = array<i64: 1, 8, 32>}]} {
    %c0 = arith.constant 0 : index
    %c0_0 = arith.constant 0 : index
    %c0_1 = arith.constant 0 : index
    %0 = vector.load %arg1[%c0, %c0_0, %c0_1] : memref<1x8x32xbf16, #tpu.memory_space<vmem>>, vector<1x8x32xbf16>
    %1 = vector.shape_cast %0 : vector<1x8x32xbf16> to vector<8x32xbf16>
    %c0_2 = arith.constant 0 : index
    %c0_3 = arith.constant 0 : index
    %c0_4 = arith.constant 0 : index
    %2 = vector.load %arg2[%c0_2, %c0_3, %c0_4] : memref<1x16x32xbf16, #tpu.memory_space<vmem>>, vector<1x16x32xbf16>
    %3 = vector.shape_cast %2 : vector<1x16x32xbf16> to vector<16x32xbf16>
    %c0_5 = arith.constant 0 : index
    %c0_6 = arith.constant 0 : index
    %c0_7 = arith.constant 0 : index
    %4 = vector.load %arg3[%c0_5, %c0_6, %c0_7] : memref<1x1x16xf32, #tpu.memory_space<vmem>>, vector<1x1x16xf32>
    %5 = vector.shape_cast %4 : vector<1x1x16xf32> to vector<1x16xf32>
    %c0_8 = arith.constant 0 : index
    %c0_9 = arith.constant 0 : index
    %c0_10 = arith.constant 0 : index
    %6 = vector.load %arg4[%c0_8, %c0_9, %c0_10] : memref<1x32x32xbf16, #tpu.memory_space<vmem>>, vector<1x32x32xbf16>
    %7 = vector.shape_cast %6 : vector<1x32x32xbf16> to vector<32x32xbf16>
    %cst = arith.constant dense<0.000000e+00> : vector<8x32xf32>
    %8 = tpu.matmul %1, %7, %cst {dimension_numbers = #tpu.dot_dimension_numbers<[1], [0], [0], [1], [0, 0, 1, 1], [], []>} : vector<8x32xbf16>, vector<32x32xbf16>, vector<8x32xf32> -> vector<8x32xf32>
    %c0_11 = arith.constant 0 : index
    %c0_12 = arith.constant 0 : index
    %c0_13 = arith.constant 0 : index
    %9 = vector.load %arg5[%c0_11, %c0_12, %c0_13] : memref<1x1x32xf32, #tpu.memory_space<vmem>>, vector<1x1x32xf32>
    %10 = vector.shape_cast %9 : vector<1x1x32xf32> to vector<32xf32>
    %11 = vector.shape_cast %10 : vector<32xf32> to vector<1x32xf32>
    %12 = vector.broadcast %11 : vector<1x32xf32> to vector<8x32xf32>
    %13 = arith.addf %8, %12 : vector<8x32xf32>
    %c0_14 = arith.constant 0 : index
    %c0_15 = arith.constant 0 : index
    %c0_16 = arith.constant 0 : index
    %14 = vector.load %arg6[%c0_14, %c0_15, %c0_16] : memref<1x32x64xbf16, #tpu.memory_space<vmem>>, vector<1x32x64xbf16>
    %15 = vector.shape_cast %14 : vector<1x32x64xbf16> to vector<32x64xbf16>
    %cst_17 = arith.constant dense<0.000000e+00> : vector<16x64xf32>
    %16 = tpu.matmul %3, %15, %cst_17 {dimension_numbers = #tpu.dot_dimension_numbers<[1], [0], [0], [1], [0, 0, 1, 1], [], []>} : vector<16x32xbf16>, vector<32x64xbf16>, vector<16x64xf32> -> vector<16x64xf32>
    %c0_18 = arith.constant 0 : index
    %c0_19 = arith.constant 0 : index
    %c0_20 = arith.constant 0 : index
    %17 = vector.load %arg7[%c0_18, %c0_19, %c0_20] : memref<1x1x64xf32, #tpu.memory_space<vmem>>, vector<1x1x64xf32>
    %18 = vector.shape_cast %17 : vector<1x1x64xf32> to vector<64xf32>
    %19 = vector.shape_cast %18 : vector<64xf32> to vector<1x64xf32>
    %20 = vector.broadcast %19 : vector<1x64xf32> to vector<16x64xf32>
    %21 = arith.addf %16, %20 : vector<16x64xf32>
    %22 = arith.truncf %13 : vector<8x32xf32> to vector<8x32xbf16>
    %23 = vector.extract_strided_slice %21 {offsets = [0, 0], sizes = [16, 32], strides = [1, 1]} : vector<16x64xf32> to vector<16x32xf32>
    %24 = arith.truncf %23 : vector<16x32xf32> to vector<16x32xbf16>
    %25 = vector.extract_strided_slice %21 {offsets = [0, 32], sizes = [16, 32], strides = [1, 1]} : vector<16x64xf32> to vector<16x32xf32>
    %26 = arith.truncf %25 : vector<16x32xf32> to vector<16x32xbf16>
    %27 = vector.extract_strided_slice %22 {offsets = [0, 0], sizes = [8, 8], strides = [1, 1]} : vector<8x32xbf16> to vector<8x8xbf16>
    %28 = vector.extract_strided_slice %24 {offsets = [0, 0], sizes = [16, 8], strides = [1, 1]} : vector<16x32xbf16> to vector<16x8xbf16>
    %cst_21 = arith.constant dense<0.000000e+00> : vector<8x16xf32>
    %29 = tpu.matmul %27, %28, %cst_21 {dimension_numbers = #tpu.dot_dimension_numbers<[1], [1], [0], [0], [0, 0, 1, 0], [], []>} : vector<8x8xbf16>, vector<16x8xbf16>, vector<8x16xf32> -> vector<8x16xf32>
    %30 = vector.broadcast %5 : vector<1x16xf32> to vector<8x16xf32>
    %31 = arith.addf %29, %30 : vector<8x16xf32>
    %cst_22 = arith.constant dense<0xFF800000> : vector<8xf32>
    %32 = vector.multi_reduction <maximumf>, %31, %cst_22 [1] : vector<8x16xf32> to vector<8xf32>
    %33 = vector.shape_cast %32 : vector<8xf32> to vector<8x1xf32>
    %34 = vector.broadcast %33 : vector<8x1xf32> to vector<8x16xf32>
    %35 = arith.subf %31, %34 : vector<8x16xf32>
    %36 = math.exp %35 : vector<8x16xf32>
    %cst_23 = arith.constant dense<0.000000e+00> : vector<8xf32>
    %37 = vector.multi_reduction <add>, %36, %cst_23 [1] : vector<8x16xf32> to vector<8xf32>
    %38 = vector.shape_cast %37 : vector<8xf32> to vector<8x1xf32>
    %39 = tpu.reciprocal %38 {approx = true} : vector<8x1xf32> -> vector<8x1xf32>
    %40 = vector.broadcast %39 : vector<8x1xf32> to vector<8x16xf32>
    %41 = arith.mulf %36, %40 : vector<8x16xf32>
    %42 = arith.truncf %41 : vector<8x16xf32> to vector<8x16xbf16>
    %43 = vector.extract_strided_slice %26 {offsets = [0, 0], sizes = [16, 8], strides = [1, 1]} : vector<16x32xbf16> to vector<16x8xbf16>
    %cst_24 = arith.constant dense<0.000000e+00> : vector<8x8xf32>
    %44 = tpu.matmul %42, %43, %cst_24 {dimension_numbers = #tpu.dot_dimension_numbers<[1], [0], [0], [1], [0, 0, 1, 1], [], []>} : vector<8x16xbf16>, vector<16x8xbf16>, vector<8x8xf32> -> vector<8x8xf32>
    %45 = vector.extract_strided_slice %22 {offsets = [0, 8], sizes = [8, 8], strides = [1, 1]} : vector<8x32xbf16> to vector<8x8xbf16>
    %46 = vector.extract_strided_slice %24 {offsets = [0, 8], sizes = [16, 8], strides = [1, 1]} : vector<16x32xbf16> to vector<16x8xbf16>
    %cst_25 = arith.constant dense<0.000000e+00> : vector<8x16xf32>
    %47 = tpu.matmul %45, %46, %cst_25 {dimension_numbers = #tpu.dot_dimension_numbers<[1], [1], [0], [0], [0, 0, 1, 0], [], []>} : vector<8x8xbf16>, vector<16x8xbf16>, vector<8x16xf32> -> vector<8x16xf32>
    %48 = vector.broadcast %5 : vector<1x16xf32> to vector<8x16xf32>
    %49 = arith.addf %47, %48 : vector<8x16xf32>
    %cst_26 = arith.constant dense<0xFF800000> : vector<8xf32>
    %50 = vector.multi_reduction <maximumf>, %49, %cst_26 [1] : vector<8x16xf32> to vector<8xf32>
    %51 = vector.shape_cast %50 : vector<8xf32> to vector<8x1xf32>
    %52 = vector.broadcast %51 : vector<8x1xf32> to vector<8x16xf32>
    %53 = arith.subf %49, %52 : vector<8x16xf32>
    %54 = math.exp %53 : vector<8x16xf32>
    %cst_27 = arith.constant dense<0.000000e+00> : vector<8xf32>
    %55 = vector.multi_reduction <add>, %54, %cst_27 [1] : vector<8x16xf32> to vector<8xf32>
    %56 = vector.shape_cast %55 : vector<8xf32> to vector<8x1xf32>
    %57 = tpu.reciprocal %56 {approx = true} : vector<8x1xf32> -> vector<8x1xf32>
    %58 = vector.broadcast %57 : vector<8x1xf32> to vector<8x16xf32>
    %59 = arith.mulf %54, %58 : vector<8x16xf32>
    %60 = arith.truncf %59 : vector<8x16xf32> to vector<8x16xbf16>
    %61 = vector.extract_strided_slice %26 {offsets = [0, 8], sizes = [16, 8], strides = [1, 1]} : vector<16x32xbf16> to vector<16x8xbf16>
    %cst_28 = arith.constant dense<0.000000e+00> : vector<8x8xf32>
    %62 = tpu.matmul %60, %61, %cst_28 {dimension_numbers = #tpu.dot_dimension_numbers<[1], [0], [0], [1], [0, 0, 1, 1], [], []>} : vector<8x16xbf16>, vector<16x8xbf16>, vector<8x8xf32> -> vector<8x8xf32>
    %63 = vector.extract_strided_slice %22 {offsets = [0, 16], sizes = [8, 8], strides = [1, 1]} : vector<8x32xbf16> to vector<8x8xbf16>
    %64 = vector.extract_strided_slice %24 {offsets = [0, 16], sizes = [16, 8], strides = [1, 1]} : vector<16x32xbf16> to vector<16x8xbf16>
    %cst_29 = arith.constant dense<0.000000e+00> : vector<8x16xf32>
    %65 = tpu.matmul %63, %64, %cst_29 {dimension_numbers = #tpu.dot_dimension_numbers<[1], [1], [0], [0], [0, 0, 1, 0], [], []>} : vector<8x8xbf16>, vector<16x8xbf16>, vector<8x16xf32> -> vector<8x16xf32>
    %66 = vector.broadcast %5 : vector<1x16xf32> to vector<8x16xf32>
    %67 = arith.addf %65, %66 : vector<8x16xf32>
    %cst_30 = arith.constant dense<0xFF800000> : vector<8xf32>
    %68 = vector.multi_reduction <maximumf>, %67, %cst_30 [1] : vector<8x16xf32> to vector<8xf32>
    %69 = vector.shape_cast %68 : vector<8xf32> to vector<8x1xf32>
    %70 = vector.broadcast %69 : vector<8x1xf32> to vector<8x16xf32>
    %71 = arith.subf %67, %70 : vector<8x16xf32>
    %72 = math.exp %71 : vector<8x16xf32>
    %cst_31 = arith.constant dense<0.000000e+00> : vector<8xf32>
    %73 = vector.multi_reduction <add>, %72, %cst_31 [1] : vector<8x16xf32> to vector<8xf32>
    %74 = vector.shape_cast %73 : vector<8xf32> to vector<8x1xf32>
    %75 = tpu.reciprocal %74 {approx = true} : vector<8x1xf32> -> vector<8x1xf32>
    %76 = vector.broadcast %75 : vector<8x1xf32> to vector<8x16xf32>
    %77 = arith.mulf %72, %76 : vector<8x16xf32>
    %78 = arith.truncf %77 : vector<8x16xf32> to vector<8x16xbf16>
    %79 = vector.extract_strided_slice %26 {offsets = [0, 16], sizes = [16, 8], strides = [1, 1]} : vector<16x32xbf16> to vector<16x8xbf16>
    %cst_32 = arith.constant dense<0.000000e+00> : vector<8x8xf32>
    %80 = tpu.matmul %78, %79, %cst_32 {dimension_numbers = #tpu.dot_dimension_numbers<[1], [0], [0], [1], [0, 0, 1, 1], [], []>} : vector<8x16xbf16>, vector<16x8xbf16>, vector<8x8xf32> -> vector<8x8xf32>
    %81 = vector.extract_strided_slice %22 {offsets = [0, 24], sizes = [8, 8], strides = [1, 1]} : vector<8x32xbf16> to vector<8x8xbf16>
    %82 = vector.extract_strided_slice %24 {offsets = [0, 24], sizes = [16, 8], strides = [1, 1]} : vector<16x32xbf16> to vector<16x8xbf16>
    %cst_33 = arith.constant dense<0.000000e+00> : vector<8x16xf32>
    %83 = tpu.matmul %81, %82, %cst_33 {dimension_numbers = #tpu.dot_dimension_numbers<[1], [1], [0], [0], [0, 0, 1, 0], [], []>} : vector<8x8xbf16>, vector<16x8xbf16>, vector<8x16xf32> -> vector<8x16xf32>
    %84 = vector.broadcast %5 : vector<1x16xf32> to vector<8x16xf32>
    %85 = arith.addf %83, %84 : vector<8x16xf32>
    %cst_34 = arith.constant dense<0xFF800000> : vector<8xf32>
    %86 = vector.multi_reduction <maximumf>, %85, %cst_34 [1] : vector<8x16xf32> to vector<8xf32>
    %87 = vector.shape_cast %86 : vector<8xf32> to vector<8x1xf32>
    %88 = vector.broadcast %87 : vector<8x1xf32> to vector<8x16xf32>
    %89 = arith.subf %85, %88 : vector<8x16xf32>
    %90 = math.exp %89 : vector<8x16xf32>
    %cst_35 = arith.constant dense<0.000000e+00> : vector<8xf32>
    %91 = vector.multi_reduction <add>, %90, %cst_35 [1] : vector<8x16xf32> to vector<8xf32>
    %92 = vector.shape_cast %91 : vector<8xf32> to vector<8x1xf32>
    %93 = tpu.reciprocal %92 {approx = true} : vector<8x1xf32> -> vector<8x1xf32>
    %94 = vector.broadcast %93 : vector<8x1xf32> to vector<8x16xf32>
    %95 = arith.mulf %90, %94 : vector<8x16xf32>
    %96 = arith.truncf %95 : vector<8x16xf32> to vector<8x16xbf16>
    %97 = vector.extract_strided_slice %26 {offsets = [0, 24], sizes = [16, 8], strides = [1, 1]} : vector<16x32xbf16> to vector<16x8xbf16>
    %cst_36 = arith.constant dense<0.000000e+00> : vector<8x8xf32>
    %98 = tpu.matmul %96, %97, %cst_36 {dimension_numbers = #tpu.dot_dimension_numbers<[1], [0], [0], [1], [0, 0, 1, 1], [], []>} : vector<8x16xbf16>, vector<16x8xbf16>, vector<8x8xf32> -> vector<8x8xf32>
    %99 = tpu.concatenate %44, %62, %80, %98 in 1 : vector<8x8xf32>, vector<8x8xf32>, vector<8x8xf32>, vector<8x8xf32> -> vector<8x32xf32>
    %c0_37 = arith.constant 0 : index
    %c0_38 = arith.constant 0 : index
    %c0_39 = arith.constant 0 : index
    %100 = vector.load %arg8[%c0_37, %c0_38, %c0_39] : memref<1x8x32xf32, #tpu.memory_space<vmem>>, vector<1x8x32xf32>
    %101 = vector.shape_cast %100 : vector<1x8x32xf32> to vector<8x32xf32>
    %102 = vector.shape_cast %99 : vector<8x32xf32> to vector<1x8x32xf32>
    tpu.vector_store %arg8[%c0_37, %c0_38, %c0_39], %102 {strides = array<i32>} : memref<1x8x32xf32, #tpu.memory_space<vmem>>, vector<1x8x32xf32>,
    return
  }
  func.func @transform_0(%arg0: i32) -> (i32, i32, i32) {
    %c0_i32 = arith.constant 0 : i32
    %c0_i32_0 = arith.constant 0 : i32
    %c0_i32_1 = arith.constant 0 : i32
    return %arg0, %c0_i32, %c0_i32_0 : i32, i32, i32
  }
  func.func @transform_1(%arg0: i32) -> (i32, i32, i32) {
    %c0_i32 = arith.constant 0 : i32
    %c0_i32_0 = arith.constant 0 : i32
    %c0_i32_1 = arith.constant 0 : i32
    return %arg0, %c0_i32, %c0_i32_0 : i32, i32, i32
  }
  func.func @transform_2(%arg0: i32) -> (i32, i32, i32) {
    %c0_i32 = arith.constant 0 : i32
    %c0_i32_0 = arith.constant 0 : i32
    %c0_i32_1 = arith.constant 0 : i32
    return %arg0, %c0_i32, %c0_i32_0 : i32, i32, i32
  }
  func.func @transform_3(%arg0: i32) -> (i32, i32, i32) {
    %c0_i32 = arith.constant 0 : i32
    %c0_i32_0 = arith.constant 0 : i32
    %c0_i32_1 = arith.constant 0 : i32
    %c0_i32_2 = arith.constant 0 : i32
    return %c0_i32, %c0_i32_0, %c0_i32_1 : i32, i32, i32
  }
  func.func @transform_4(%arg0: i32) -> (i32, i32, i32) {
    %c0_i32 = arith.constant 0 : i32
    %c0_i32_0 = arith.constant 0 : i32
    %c0_i32_1 = arith.constant 0 : i32
    %c0_i32_2 = arith.constant 0 : i32
    return %c0_i32, %c0_i32_0, %c0_i32_1 : i32, i32, i32
  }
  func.func @transform_5(%arg0: i32) -> (i32, i32, i32) {
    %c0_i32 = arith.constant 0 : i32
    %c0_i32_0 = arith.constant 0 : i32
    %c0_i32_1 = arith.constant 0 : i32
    %c0_i32_2 = arith.constant 0 : i32
    return %c0_i32, %c0_i32_0, %c0_i32_1 : i32, i32, i32
  }
  func.func @transform_6(%arg0: i32) -> (i32, i32, i32) {
    %c0_i32 = arith.constant 0 : i32
    %c0_i32_0 = arith.constant 0 : i32
    %c0_i32_1 = arith.constant 0 : i32
    %c0_i32_2 = arith.constant 0 : i32
    return %c0_i32, %c0_i32_0, %c0_i32_1 : i32, i32, i32
  }
  func.func @transform_7(%arg0: i32) -> (i32, i32, i32) {
    %c0_i32 = arith.constant 0 : i32
    %c0_i32_0 = arith.constant 0 : i32
    %c0_i32_1 = arith.constant 0 : i32
    return %arg0, %c0_i32, %c0_i32_0 : i32, i32, i32
  }
}

</mosaic_0001>

<llo_original>
// kernel: run.5
$region0: #{run.5}
  #allocation0 [shape = 'u32[]', space=smem, size = 0x4, offset = 0x4, fixed_abs, tag = 'smem constant byte address 0x4 - core index']
  #allocation1 [shape = 'u32[144,128]{1,0:T(1,128)}', space=vmem, size = 0x12000, scoped, tag = 'internal scratch']
  %s0 = inlined_call_operand.vmem [shape: bf16[2,8,32], index: 0, kind: input, shape index: {}]
  %s1 = inlined_call_operand.vmem [shape: bf16[2,16,32], index: 1, kind: input, shape index: {}]
  %s2 = inlined_call_operand.vmem [shape: f32[2,1,16], index: 2, kind: input, shape index: {}]
  %s3 = inlined_call_operand.vmem [shape: bf16[1,32,32], index: 3, kind: input, shape index: {}]
  %s4 = inlined_call_operand.vmem [shape: f32[1,1,32], index: 4, kind: input, shape index: {}]
  %s5 = inlined_call_operand.vmem [shape: bf16[1,32,64], index: 5, kind: input, shape index: {}]
  %s6 = inlined_call_operand.vmem [shape: f32[1,1,64], index: 6, kind: input, shape index: {}]
  %s7 = inlined_call_operand.vmem [shape: f32[2,8,32], index: 7, kind: output, shape index: {}]
  %s8 = sld [smem:[#allocation0]]
  $region61: #{run.5} parent=0
    _
  %s10 = ssub.s32 1, %s8
  %s11 = scalar_select 0, %s10, %s8
  loop: start=0, step=1, limit=4
  $region2: #{run.5} parent=0 // loop_pre_header
    _
  $region3: #{run.5} parent=0 // loop_header
    %s13 = sphi 0, %s17
    %p14 = scmp.ge.s32.totalorder %s13, 4
    %s23 = sphi 0, %s25
    %s26 = sphi 0, %s23
    %s27 = sphi 0, %s26
    %s43 = sphi 0, %s27
    %s49 = sphi 0, %s51
    %s52 = sphi 0, %s49
    %s53 = sphi 0, %s52
    %s69 = sphi 0, %s53
    %s75 = sphi 0, %s77
    %s78 = sphi 0, %s75
    %s79 = sphi 0, %s78
    %s95 = sphi 0, %s79
    %s99 = sphi 0, %s99
    %s101 = sphi 0, %s99
    %s102 = sphi 0, %s101
    %s116 = sphi 0, %s102
    %s120 = sphi 0, %s120
    %s122 = sphi 0, %s120
    %s123 = sphi 0, %s122
    %s137 = sphi 0, %s123
    %s141 = sphi 0, %s141
    %s143 = sphi 0, %s141
    %s144 = sphi 0, %s143
    %s158 = sphi 0, %s144
    %s162 = sphi 0, %s162
    %s164 = sphi 0, %s162
    %s165 = sphi 0, %s164
    %s179 = sphi 0, %s165
    %s185 = sphi 0, %s187
    %s188 = sphi 0, %s185
    %s189 = sphi 0, %s188
    %s205 = sphi 0, %s189
  $region4: #{run.5} parent=0 // loop_header_branch
    %16 = sbr.rel (%p14) target = $region8
  $region5: #{run.5} parent=0 // loop_body
    %s18 = ssub.s32 %s13, 1
    %s19 = ssub.s32 %s13, 2
    %s20 = sadd.s32 %s13, 1
    %s21 = ssub.s32 %s13, %s20
    %p22 = scmp.eq.s32.totalorder %s21, 0
    %s24 = sadd.s32 %s23, 1
    %s25 = scalar_select %p22, %s23, %s24
    %p28 = pneg %p22
    %p29 = scmp.eq.s32.totalorder %s13, 1
    %p30 = por %p28, %p29
    %p31 = scmp.ne.s32.totalorder %s23, %s26
    %p32 = scmp.eq.s32.totalorder %s13, 0
    %p33 = por %p31, %p32
    %p34 = scmp.ne.s32.totalorder %s23, %s26
    %p35 = scmp.eq.s32.totalorder %s18, 1
    %p36 = por %p34, %p35
    %p37 = scmp.ne.s32.totalorder %s26, %s27
    %p38 = scmp.eq.s32.totalorder %s18, 0
    %p39 = por %p37, %p38
    %p40 = scmp.ne.s32.totalorder %s26, %s27
    %p41 = scmp.eq.s32.totalorder %s19, 1
    %p42 = por %p40, %p41
    %p44 = scmp.ne.s32.totalorder %s27, %s43
    %p45 = scmp.eq.s32.totalorder %s19, 0
    %p46 = por %p44, %p45
    %s47 = ssub.s32 %s13, %s20
    %p48 = scmp.eq.s32.totalorder %s47, 0
    %s50 = sadd.s32 %s49, 1
    %s51 = scalar_select %p48, %s49, %s50
    %p54 = pneg %p48
    %p55 = scmp.eq.s32.totalorder %s13, 1
    %p56 = por %p54, %p55
    %p57 = scmp.ne.s32.totalorder %s49, %s52
    %p58 = scmp.eq.s32.totalorder %s13, 0
    %p59 = por %p57, %p58
    %p60 = scmp.ne.s32.totalorder %s49, %s52
    %p61 = scmp.eq.s32.totalorder %s18, 1
    %p62 = por %p60, %p61
    %p63 = scmp.ne.s32.totalorder %s52, %s53
    %p64 = scmp.eq.s32.totalorder %s18, 0
    %p65 = por %p63, %p64
    %p66 = scmp.ne.s32.totalorder %s52, %s53
    %p67 = scmp.eq.s32.totalorder %s19, 1
    %p68 = por %p66, %p67
    %p70 = scmp.ne.s32.totalorder %s53, %s69
    %p71 = scmp.eq.s32.totalorder %s19, 0
    %p72 = por %p70, %p71
    %s73 = ssub.s32 %s13, %s20
    %p74 = scmp.eq.s32.totalorder %s73, 0
    %s76 = sadd.s32 %s75, 1
    %s77 = scalar_select %p74, %s75, %s76
    %p80 = pneg %p74
    %p81 = scmp.eq.s32.totalorder %s13, 1
    %p82 = por %p80, %p81
    %p83 = scmp.ne.s32.totalorder %s75, %s78
    %p84 = scmp.eq.s32.totalorder %s13, 0
    %p85 = por %p83, %p84
    %p86 = scmp.ne.s32.totalorder %s75, %s78
    %p87 = scmp.eq.s32.totalorder %s18, 1
    %p88 = por %p86, %p87
    %p89 = scmp.ne.s32.totalorder %s78, %s79
    %p90 = scmp.eq.s32.totalorder %s18, 0
    %p91 = por %p89, %p90
    %p92 = scmp.ne.s32.totalorder %s78, %s79
    %p93 = scmp.eq.s32.totalorder %s19, 1
    %p94 = por %p92, %p93
    %p96 = scmp.ne.s32.totalorder %s79, %s95
    %p97 = scmp.eq.s32.totalorder %s19, 0
    %p98 = por %p96, %p97
    %s100 = sadd.s32 %s99, 1
    %p103 = scmp.eq.s32.totalorder %s13, 1
    %p104 = scmp.ne.s32.totalorder %s99, %s101
    %p105 = scmp.eq.s32.totalorder %s13, 0
    %p106 = por %p104, %p105
    %p107 = scmp.ne.s32.totalorder %s99, %s101
    %p108 = scmp.eq.s32.totalorder %s18, 1
    %p109 = por %p107, %p108
    %p110 = scmp.ne.s32.totalorder %s101, %s102
    %p111 = scmp.eq.s32.totalorder %s18, 0
    %p112 = por %p110, %p111
    %p113 = scmp.ne.s32.totalorder %s101, %s102
    %p114 = scmp.eq.s32.totalorder %s19, 1
    %p115 = por %p113, %p114
    %p117 = scmp.ne.s32.totalorder %s102, %s116
    %p118 = scmp.eq.s32.totalorder %s19, 0
    %p119 = por %p117, %p118
    %s121 = sadd.s32 %s120, 1
    %p124 = scmp.eq.s32.totalorder %s13, 1
    %p125 = scmp.ne.s32.totalorder %s120, %s122
    %p126 = scmp.eq.s32.totalorder %s13, 0
    %p127 = por %p125, %p126
    %p128 = scmp.ne.s32.totalorder %s120, %s122
    %p129 = scmp.eq.s32.totalorder %s18, 1
    %p130 = por %p128, %p129
    %p131 = scmp.ne.s32.totalorder %s122, %s123
    %p132 = scmp.eq.s32.totalorder %s18, 0
    %p133 = por %p131, %p132
    %p134 = scmp.ne.s32.totalorder %s122, %s123
    %p135 = scmp.eq.s32.totalorder %s19, 1
    %p136 = por %p134, %p135
    %p138 = scmp.ne.s32.totalorder %s123, %s137
    %p139 = scmp.eq.s32.totalorder %s19, 0
    %p140 = por %p138, %p139
    %s142 = sadd.s32 %s141, 1
    %p145 = scmp.eq.s32.totalorder %s13, 1
    %p146 = scmp.ne.s32.totalorder %s141, %s143
    %p147 = scmp.eq.s32.totalorder %s13, 0
    %p148 = por %p146, %p147
    %p149 = scmp.ne.s32.totalorder %s141, %s143
    %p150 = scmp.eq.s32.totalorder %s18, 1
    %p151 = por %p149, %p150
    %p152 = scmp.ne.s32.totalorder %s143, %s144
    %p153 = scmp.eq.s32.totalorder %s18, 0
    %p154 = por %p152, %p153
    %p155 = scmp.ne.s32.totalorder %s143, %s144
    %p156 = scmp.eq.s32.totalorder %s19, 1
    %p157 = por %p155, %p156
    %p159 = scmp.ne.s32.totalorder %s144, %s158
    %p160 = scmp.eq.s32.totalorder %s19, 0
    %p161 = por %p159, %p160
    %s163 = sadd.s32 %s162, 1
    %p166 = scmp.eq.s32.totalorder %s13, 1
    %p167 = scmp.ne.s32.totalorder %s162, %s164
    %p168 = scmp.eq.s32.totalorder %s13, 0
    %p169 = por %p167, %p168
    %p170 = scmp.ne.s32.totalorder %s162, %s164
    %p171 = scmp.eq.s32.totalorder %s18, 1
    %p172 = por %p170, %p171
    %p173 = scmp.ne.s32.totalorder %s164, %s165
    %p174 = scmp.eq.s32.totalorder %s18, 0
    %p175 = por %p173, %p174
    %p176 = scmp.ne.s32.totalorder %s164, %s165
    %p177 = scmp.eq.s32.totalorder %s19, 1
    %p178 = por %p176, %p177
    %p180 = scmp.ne.s32.totalorder %s165, %s179
    %p181 = scmp.eq.s32.totalorder %s19, 0
    %p182 = por %p180, %p181
    %s183 = ssub.s32 %s13, %s20
    %p184 = scmp.eq.s32.totalorder %s183, 0
    %s186 = sadd.s32 %s185, 1
    %s187 = scalar_select %p184, %s185, %s186
    %p190 = pneg %p184
    %p191 = scmp.eq.s32.totalorder %s13, 1
    %p192 = por %p190, %p191
    %p193 = scmp.ne.s32.totalorder %s185, %s188
    %p194 = scmp.eq.s32.totalorder %s13, 0
    %p195 = por %p193, %p194
    %p196 = scmp.ne.s32.totalorder %s185, %s188
    %p197 = scmp.eq.s32.totalorder %s18, 1
    %p198 = por %p196, %p197
    %p199 = scmp.ne.s32.totalorder %s188, %s189
    %p200 = scmp.eq.s32.totalorder %s18, 0
    %p201 = por %p199, %p200
    %p202 = scmp.ne.s32.totalorder %s188, %s189
    %p203 = scmp.eq.s32.totalorder %s19, 1
    %p204 = por %p202, %p203
    %p206 = scmp.ne.s32.totalorder %s189, %s205
    %p207 = scmp.eq.s32.totalorder %s19, 0
    %p208 = por %p206, %p207
    %p209 = scmp.le.s32.totalorder 1, %s13
    %p210 = scmp.lt.s32.totalorder %s13, 3
    %p211 = pnand %p209, %p210
    %p212 = pneg %p211
    // Predicated region
    $region9: #{run.5} parent=5 // pred_check
      _
    $region10: #{run.5} parent=5 // pred_check_branch
      %214 = sbr.rel (%p211) target = $region12
    $region11: #{run.5} parent=5 // pred_region
      %s215 = ssub.s32 %s13, 1
      // Predicated region
      $region13: #{run.5} parent=11 // pred_check
        %p216 = pneg %p112
      $region14: #{run.5} parent=11 // pred_check_branch
        %218 = sbr.rel (%p216) target = $region16
      $region15: #{run.5} parent=11 // pred_region
        _
      $region16: #{run.5} parent=11 // pred_fallthru
        _
      // Predicated region
      $region17: #{run.5} parent=11 // pred_check
        %p219 = pneg %p133
      $region18: #{run.5} parent=11 // pred_check_branch
        %221 = sbr.rel (%p219) target = $region20
      $region19: #{run.5} parent=11 // pred_region
        _
      $region20: #{run.5} parent=11 // pred_fallthru
        _
      // Predicated region
      $region21: #{run.5} parent=11 // pred_check
        %p222 = pneg %p154
      $region22: #{run.5} parent=11 // pred_check_branch
        %224 = sbr.rel (%p222) target = $region24
      $region23: #{run.5} parent=11 // pred_region
        _
      $region24: #{run.5} parent=11 // pred_fallthru
        _
      // Predicated region
      $region25: #{run.5} parent=11 // pred_check
        %p225 = pneg %p175
      $region26: #{run.5} parent=11 // pred_check_branch
        %227 = sbr.rel (%p225) target = $region28
      $region27: #{run.5} parent=11 // pred_region
        _
      $region28: #{run.5} parent=11 // pred_fallthru
        _
    $region12: #{run.5} parent=5 // pred_fallthru
      _
    %p228 = scmp.lt.s32.totalorder %s13, 2
    // Predicated region
    $region29: #{run.5} parent=5 // pred_check
      %p229 = pneg %p228
    $region30: #{run.5} parent=5 // pred_check_branch
      %231 = sbr.rel (%p229) target = $region32
    $region31: #{run.5} parent=5 // pred_region
      // Predicated region
      $region33: #{run.5} parent=31 // pred_check
        %p232 = pneg %p33
      $region34: #{run.5} parent=31 // pred_check_branch
        %234 = sbr.rel (%p232) target = $region36
      $region35: #{run.5} parent=31 // pred_region
        %p235 = scmp.lt.s32.totalorder %s13, 1
        %s236 = scalar_select %p235, %s13, 1
        %s237 = smul.addr %s236, 4
        %s238 = scalar_lea.vmem %s0, %s237
      $region36: #{run.5} parent=31 // pred_fallthru
        _
      // Predicated region
      $region37: #{run.5} parent=31 // pred_check
        %p239 = pneg %p59
      $region38: #{run.5} parent=31 // pred_check_branch
        %241 = sbr.rel (%p239) target = $region40
      $region39: #{run.5} parent=31 // pred_region
        %p242 = scmp.lt.s32.totalorder %s13, 1
        %s243 = scalar_select %p242, %s13, 1
        %s244 = smul.addr %s243, 2
        %s245 = smul.addr %s244, 4
        %s246 = scalar_lea.vmem %s1, %s245
      $region40: #{run.5} parent=31 // pred_fallthru
        _
      // Predicated region
      $region41: #{run.5} parent=31 // pred_check
        %p247 = pneg %p85
      $region42: #{run.5} parent=31 // pred_check_branch
        %249 = sbr.rel (%p247) target = $region44
      $region43: #{run.5} parent=31 // pred_region
        %p250 = scmp.lt.s32.totalorder %s13, 1
        %s251 = scalar_select %p250, %s13, 1
        %s252 = scalar_lea.vmem %s2, %s251
      $region44: #{run.5} parent=31 // pred_fallthru
        _
    $region32: #{run.5} parent=5 // pred_fallthru
      _
    %p253 = scmp.le.s32.totalorder 1, %s13
    %p254 = scmp.lt.s32.totalorder %s13, 3
    %p255 = pnand %p253, %p254
    %p256 = pneg %p255
    // Predicated region
    $region45: #{run.5} parent=5 // pred_check
      _
    $region46: #{run.5} parent=5 // pred_check_branch
      %258 = sbr.rel (%p255) target = $region48
    $region47: #{run.5} parent=5 // pred_region
      %s259 = ssub.s32 %s13, 1
      %p260 = scmp.lt.s32.totalorder %s18, 1
      %s261 = scalar_select %p260, %s18, 1
      %s262 = smul.addr %s261, 4
      %s263 = scalar_lea.vmem %s0, %s262
      %p264 = pneg %p39
      %p265 = pneg %p36
      %p266 = scmp.lt.s32.totalorder %s18, 1
      %s267 = scalar_select %p266, %s18, 1
      %s268 = smul.addr %s267, 2
      %s269 = smul.addr %s268, 4
      %s270 = scalar_lea.vmem %s1, %s269
      %p271 = pneg %p65
      %p272 = pneg %p62
      %p273 = scmp.lt.s32.totalorder %s18, 1
      %s274 = scalar_select %p273, %s18, 1
      %s275 = scalar_lea.vmem %s2, %s274
      %p276 = pneg %p91
      %p277 = pneg %p88
      %p278 = pneg %p112
      %p279 = pneg %p109
      %p280 = pneg %p133
      %p281 = pneg %p130
      %p282 = pneg %p154
      %p283 = pneg %p151
      %p284 = pneg %p175
      %p285 = pneg %p172
      %p286 = pneg %p201
      %p287 = pneg %p198
      %p288 = scmp.lt.s32.totalorder %s18, 1
      %s289 = scalar_select %p288, %s18, 1
      %s290 = smul.addr %s289, 8
      %s291 = scalar_lea.vmem %s7, %s290
      %p292 = scmp.lt.s32.totalorder %s18, 1
      %s293 = scalar_select %p292, %s18, 1
      %s294 = smul.addr %s293, 4
      %s295 = scalar_lea.vmem %s0, %s294
      %p296 = scmp.lt.s32.totalorder %s18, 1
      %s297 = scalar_select %p296, %s18, 1
      %s298 = smul.addr %s297, 2
      %s299 = smul.addr %s298, 4
      %s300 = scalar_lea.vmem %s1, %s299
      %p301 = scmp.lt.s32.totalorder %s18, 1
      %s302 = scalar_select %p301, %s18, 1
      %s303 = scalar_lea.vmem %s2, %s302
      %p304 = scmp.lt.s32.totalorder %s18, 1
      %s305 = scalar_select %p304, %s18, 1
      %s306 = smul.addr %s305, 8
      %s307 = scalar_lea.vmem %s7, %s306
      %v309 = vld [vmem:[%s295] sm:$0xf]
      %v310 = vld [vmem:[%s300] sm:$0xf]
      %v311 = vld [vmem:[%s300 + $0x4] sm:$0xf]
      %v312 = vld [vmem:[%s303] sm:$0x1]
      %v313 = vld [vmem:[%s3] sm:$0xf]
      %v314 = vld [vmem:[%s3 + $0x4] sm:$0xf]
      %v315 = vld [vmem:[%s3 + $0x8] sm:$0xf]
      %v316 = vld [vmem:[%s3 + $0xc] sm:$0xf]
      %v317 = vld [vmem:[%s4] sm:$0x1]
      %v319 = vlaneseq
      %v320 = vshrl.u32 %v319, 7
      %v321 = vsub.s32 0, %v320
      %v322 = vrot.slane %v317, %v321
      %v328 = vunpack.c.l.b16 %v313
      %v329 = vunpack.c.l.b16 %v314
      %v330 = vunpack.c.l.b16 %v315
      %v331 = vunpack.c.l.b16 %v316
      %v332 = vpack.c.b16 %v329, %v328
      %v333 = vpack.c.b16 %v331, %v330
      %vm336 = vcmask 261120
      %v338 = vsel %vm336, %v309, 0
      %340 = vmatprep.subr.bf16.mxu0 0
      %341 = vmatpush1.bf16.msra.mxu0 0
      %342 = vmatprep.subr.bf16.mxu0 0
      %343 = vmatpush1.bf16.msra.mxu0 0
      %344 = vmatprep.subr.bf16.mxu0 0
      %345 = vmatpush1.bf16.msra.mxu0 0
      %346 = vmatprep.subr.bf16.mxu0 0
      %347 = vmatpush1.bf16.msra.mxu0 0
      %348 = vmatprep.subr.bf16.mxu0 0
      %349 = vmatpush1.bf16.msra.mxu0 0
      %350 = vmatprep.subr.bf16.mxu0 0
      %351 = vmatpush1.bf16.msra.mxu0 0
      %352 = vmatprep.subr.bf16.mxu0 0
      %353 = vmatpush1.bf16.msra.mxu0 %v333
      %354 = vmatprep.subr.bf16.mxu0 0
      %355 = vmatpush1.bf16.msra.mxu0 %v332
      %356 = vmatprep.subr.bf16.mxu0 0
      %357 = vmatpush2.bf16.msra.mxu0 0
      %358 = vmatprep.subr.bf16.mxu0 0
      %359 = vmatpush2.bf16.msra.mxu0 0
      %360 = vmatprep.subr.bf16.mxu0 0
      %361 = vmatpush2.bf16.msra.mxu0 0
      %362 = vmatprep.subr.bf16.mxu0 0
      %363 = vmatpush2.bf16.msra.mxu0 0
      %364 = vmatprep.subr.bf16.mxu0 0
      %365 = vmatpush2.bf16.msra.mxu0 0
      %366 = vmatprep.subr.bf16.mxu0 0
      %367 = vmatpush2.bf16.msra.mxu0 0
      %368 = vmatprep.subr.bf16.mxu0 0
      %369 = vmatpush2.bf16.msra.mxu0 0
      %370 = vmatprep.subr.bf16.mxu0 0
      %371 = vmatpush2.bf16.msra.mxu0 0
      %372 = vmatprep.mubr.bf16.mxu0 0
      %373 = vmatmul.mubr.bf16.gmra.mxu0 %v338
      %v374 = vpop.f32.mrf.mxu0
      %v375 = vadd.f32 %v322, %v374
      %v376 = vpop.f32.mrf.mxu0
      %v377 = vpop.f32.mrf.mxu0
      %v378 = vpop.f32.mrf.mxu0
      %379 = vdwg.mxu0
      %v380 = vld [vmem:[%s5] sm:$0xf]
      %v381 = vld [vmem:[%s5 + $0x4] sm:$0xf]
      %v382 = vld [vmem:[%s5 + $0x8] sm:$0xf]
      %v383 = vld [vmem:[%s5 + $0xc] sm:$0xf]
      %v384 = vld [vmem:[%s6] sm:$0x1]
      %v386 = vlaneseq
      %v387 = vshrl.u32 %v386, 7
      %v388 = vsub.s32 0, %v387
      %v389 = vrot.slane %v384, %v388
      %v393 = vunpack.c.l.b16 %v310
      %v394 = vunpack.c.l.b16 %v311
      %v395 = vpack.c.b16 %v394, %v393
      %v400 = vunpack.c.l.b16 %v380
      %v401 = vunpack.c.l.b16 %v381
      %v402 = vunpack.c.l.b16 %v382
      %v403 = vunpack.c.l.b16 %v383
      %v404 = vpack.c.b16 %v401, %v400
      %v405 = vpack.c.b16 %v403, %v402
      %v409 = vsel %vm336, %v395, 0
      %411 = vmatprep.subr.bf16.mxu0 0
      %412 = vmatpush1.bf16.msra.mxu0 0
      %413 = vmatprep.subr.bf16.mxu0 0
      %414 = vmatpush1.bf16.msra.mxu0 0
      %415 = vmatprep.subr.bf16.mxu0 0
      %416 = vmatpush1.bf16.msra.mxu0 0
      %417 = vmatprep.subr.bf16.mxu0 0
      %418 = vmatpush1.bf16.msra.mxu0 0
      %419 = vmatprep.subr.bf16.mxu0 0
      %420 = vmatpush1.bf16.msra.mxu0 0
      %421 = vmatprep.subr.bf16.mxu0 0
      %422 = vmatpush1.bf16.msra.mxu0 0
      %423 = vmatprep.subr.bf16.mxu0 0
      %424 = vmatpush1.bf16.msra.mxu0 %v405
      %425 = vmatprep.subr.bf16.mxu0 0
      %426 = vmatpush1.bf16.msra.mxu0 %v404
      %427 = vmatprep.subr.bf16.mxu0 0
      %428 = vmatpush2.bf16.msra.mxu0 0
      %429 = vmatprep.subr.bf16.mxu0 0
      %430 = vmatpush2.bf16.msra.mxu0 0
      %431 = vmatprep.subr.bf16.mxu0 0
      %432 = vmatpush2.bf16.msra.mxu0 0
      %433 = vmatprep.subr.bf16.mxu0 0
      %434 = vmatpush2.bf16.msra.mxu0 0
      %435 = vmatprep.subr.bf16.mxu0 0
      %436 = vmatpush2.bf16.msra.mxu0 0
      %437 = vmatprep.subr.bf16.mxu0 0
      %438 = vmatpush2.bf16.msra.mxu0 0
      %439 = vmatprep.subr.bf16.mxu0 0
      %440 = vmatpush2.bf16.msra.mxu0 0
      %441 = vmatprep.subr.bf16.mxu0 0
      %442 = vmatpush2.bf16.msra.mxu0 0
      %443 = vmatprep.mubr.bf16.mxu0 0
      %444 = vmatmul.mubr.bf16.gmra.mxu0 %v409
      %v445 = vpop.f32.mrf.mxu0
      %v446 = vadd.f32 %v389, %v445
      %v447 = vpop.f32.mrf.mxu0
      %v448 = vpop.f32.mrf.mxu0
      %v449 = vadd.f32 %v389, %v448
      %v450 = vpop.f32.mrf.mxu0
      %451 = vdwg.mxu0
      %v452 = vpack.c.bf16 %v375, %v375
      %v453 = vpack.c.bf16 %v449, %v446
      %v455 = vlaneseq
      %v456 = vshrl.u32 %v455, 7
      %v457 = vsub.s32 0, %v456
      %v458 = vrot.slane %v312, %v457
      %vm460 = vcmask 64512
      %v462 = vsel %vm460, %v452, 0
      %v465 = vsel %vm460, %v453, 0
      %467 = vmatprep.subr.bf16.mxu0 0
      %468 = vmatpush1.bf16.xpose.msra.mxu0 0
      %469 = vmatprep.subr.bf16.mxu0 0
      %470 = vmatpush1.bf16.xpose.msra.mxu0 0
      %471 = vmatprep.subr.bf16.mxu0 0
      %472 = vmatpush1.bf16.xpose.msra.mxu0 0
      %473 = vmatprep.subr.bf16.mxu0 0
      %474 = vmatpush1.bf16.xpose.msra.mxu0 0
      %475 = vmatprep.subr.bf16.mxu0 0
      %476 = vmatpush1.bf16.xpose.msra.mxu0 0
      %477 = vmatprep.subr.bf16.mxu0 0
      %478 = vmatpush1.bf16.xpose.msra.mxu0 0
      %479 = vmatprep.subr.bf16.mxu0 0
      %480 = vmatpush1.bf16.xpose.msra.mxu0 0
      %481 = vmatprep.subr.bf16.mxu0 0
      %482 = vmatpush1.bf16.xpose.msra.mxu0 %v465
      %483 = vmatprep.subr.bf16.mxu0 0
      %484 = vmatpush2.bf16.xpose.msra.mxu0 0
      %485 = vmatprep.subr.bf16.mxu0 0
      %486 = vmatpush2.bf16.xpose.msra.mxu0 0
      %487 = vmatprep.subr.bf16.mxu0 0
      %488 = vmatpush2.bf16.xpose.msra.mxu0 0
      %489 = vmatprep.subr.bf16.mxu0 0
      %490 = vmatpush2.bf16.xpose.msra.mxu0 0
      %491 = vmatprep.subr.bf16.mxu0 0
      %492 = vmatpush2.bf16.xpose.msra.mxu0 0
      %493 = vmatprep.subr.bf16.mxu0 0
      %494 = vmatpush2.bf16.xpose.msra.mxu0 0
      %495 = vmatprep.subr.bf16.mxu0 0
      %496 = vmatpush2.bf16.xpose.msra.mxu0 0
      %497 = vmatprep.subr.bf16.mxu0 0
      %498 = vmatpush2.bf16.xpose.msra.mxu0 0
      %499 = vmatprep.mubr.bf16.mxu0 0
      %500 = vmatmul.mubr.bf16.gmra.mxu0 %v462
      %v501 = vpop.f32.mrf.mxu0
      %v502 = vadd.f32 %v458, %v501
      %v503 = vpop.f32.mrf.mxu0
      %v504 = vpop.f32.mrf.mxu0
      %v505 = vpop.f32.mrf.mxu0
      %506 = vdwg.mxu0
      %vm507 = vcmask 130048
      %v508 = vsel %vm507, %v502, -inf
      %509 = vmax.xlane.f32.xlu0 %v508
      %v510 = vpop.xlane.xlu0 %509
      %v511 = vsub.f32 %v502, %v510
      %v512 = vmul.f32 %v511, 1.442695
      %v513 = vpow.pop %v512
      %v514 = vsel %vm507, %v513, 0.0
      %515 = vadd.xlane.f32.xlu0 %v514
      %v516 = vpop.xlane.xlu0 %515
      %v517 = vrcp.pop %v516
      %v518 = vmul.f32 %v513, %v517
      %v519 = vpack.c.bf16 %v518, %v518
      %521 = vrot.lane.b32.xlu0 %v453, 96
      %v522 = vpop.permute.xlu0 %521
      %v525 = vsel %vm507, %v519, 0
      %527 = vmatprep.subr.bf16.mxu0 0
      %528 = vmatpush1.bf16.msra.mxu0 0
      %529 = vmatprep.subr.bf16.mxu0 0
      %530 = vmatpush1.bf16.msra.mxu0 0
      %531 = vmatprep.subr.bf16.mxu0 0
      %532 = vmatpush1.bf16.msra.mxu0 0
      %533 = vmatprep.subr.bf16.mxu0 0
      %534 = vmatpush1.bf16.msra.mxu0 0
      %535 = vmatprep.subr.bf16.mxu0 0
      %536 = vmatpush1.bf16.msra.mxu0 0
      %537 = vmatprep.subr.bf16.mxu0 0
      %538 = vmatpush1.bf16.msra.mxu0 0
      %539 = vmatprep.subr.bf16.mxu0 0
      %540 = vmatpush1.bf16.msra.mxu0 0
      %541 = vmatprep.subr.bf16.mxu0 0
      %542 = vmatpush1.bf16.msra.mxu0 %v522
      %543 = vmatprep.subr.bf16.mxu0 0
      %544 = vmatpush2.bf16.msra.mxu0 0
      %545 = vmatprep.subr.bf16.mxu0 0
      %546 = vmatpush2.bf16.msra.mxu0 0
      %547 = vmatprep.subr.bf16.mxu0 0
      %548 = vmatpush2.bf16.msra.mxu0 0
      %549 = vmatprep.subr.bf16.mxu0 0
      %550 = vmatpush2.bf16.msra.mxu0 0
      %551 = vmatprep.subr.bf16.mxu0 0
      %552 = vmatpush2.bf16.msra.mxu0 0
      %553 = vmatprep.subr.bf16.mxu0 0
      %554 = vmatpush2.bf16.msra.mxu0 0
      %555 = vmatprep.subr.bf16.mxu0 0
      %556 = vmatpush2.bf16.msra.mxu0 0
      %557 = vmatprep.subr.bf16.mxu0 0
      %558 = vmatpush2.bf16.msra.mxu0 0
      %559 = vmatprep.mubr.bf16.mxu0 0
      %560 = vmatmul.mubr.bf16.gmra.mxu0 %v525
      %v561 = vpop.f32.mrf.mxu0
      %v562 = vadd.f32 0.0, %v561
      %v563 = vpop.f32.mrf.mxu0
      %v564 = vpop.f32.mrf.mxu0
      %v565 = vpop.f32.mrf.mxu0
      %566 = vdwg.mxu0
      %568 = vrot.lane.b32.xlu0 %v452, 120
      %v569 = vpop.permute.xlu0 %568
      %570 = vrot.lane.b32.xlu0 %v453, 120
      %v571 = vpop.permute.xlu0 %570
      %v573 = vsel %vm460, %v569, 0
      %v576 = vsel %vm460, %v571, 0
      %578 = vmatprep.subr.bf16.mxu0 0
      %579 = vmatpush1.bf16.xpose.msra.mxu0 0
      %580 = vmatprep.subr.bf16.mxu0 0
      %581 = vmatpush1.bf16.xpose.msra.mxu0 0
      %582 = vmatprep.subr.bf16.mxu0 0
      %583 = vmatpush1.bf16.xpose.msra.mxu0 0
      %584 = vmatprep.subr.bf16.mxu0 0
      %585 = vmatpush1.bf16.xpose.msra.mxu0 0
      %586 = vmatprep.subr.bf16.mxu0 0
      %587 = vmatpush1.bf16.xpose.msra.mxu0 0
      %588 = vmatprep.subr.bf16.mxu0 0
      %589 = vmatpush1.bf16.xpose.msra.mxu0 0
      %590 = vmatprep.subr.bf16.mxu0 0
      %591 = vmatpush1.bf16.xpose.msra.mxu0 0
      %592 = vmatprep.subr.bf16.mxu0 0
      %593 = vmatpush1.bf16.xpose.msra.mxu0 %v576
      %594 = vmatprep.subr.bf16.mxu0 0
      %595 = vmatpush2.bf16.xpose.msra.mxu0 0
      %596 = vmatprep.subr.bf16.mxu0 0
      %597 = vmatpush2.bf16.xpose.msra.mxu0 0
      %598 = vmatprep.subr.bf16.mxu0 0
      %599 = vmatpush2.bf16.xpose.msra.mxu0 0
      %600 = vmatprep.subr.bf16.mxu0 0
      %601 = vmatpush2.bf16.xpose.msra.mxu0 0
      %602 = vmatprep.subr.bf16.mxu0 0
      %603 = vmatpush2.bf16.xpose.msra.mxu0 0
      %604 = vmatprep.subr.bf16.mxu0 0
      %605 = vmatpush2.bf16.xpose.msra.mxu0 0
      %606 = vmatprep.subr.bf16.mxu0 0
      %607 = vmatpush2.bf16.xpose.msra.mxu0 0
      %608 = vmatprep.subr.bf16.mxu0 0
      %609 = vmatpush2.bf16.xpose.msra.mxu0 0
      %610 = vmatprep.mubr.bf16.mxu0 0
      %611 = vmatmul.mubr.bf16.gmra.mxu0 %v573
      %v612 = vpop.f32.mrf.mxu0
      %v613 = vadd.f32 %v458, %v612
      %v614 = vpop.f32.mrf.mxu0
      %v615 = vpop.f32.mrf.mxu0
      %v616 = vpop.f32.mrf.mxu0
      %617 = vdwg.mxu0
      %v618 = vsel %vm507, %v613, -inf
      %619 = vmax.xlane.f32.xlu0 %v618
      %v620 = vpop.xlane.xlu0 %619
      %v621 = vsub.f32 %v613, %v620
      %v622 = vmul.f32 %v621, 1.442695
      %v623 = vpow.pop %v622
      %v624 = vsel %vm507, %v623, 0.0
      %625 = vadd.xlane.f32.xlu0 %v624
      %v626 = vpop.xlane.xlu0 %625
      %v627 = vrcp.pop %v626
      %v628 = vmul.f32 %v623, %v627
      %v629 = vpack.c.bf16 %v628, %v628
      %630 = vrot.lane.b32.xlu0 %v453, 88
      %v631 = vpop.permute.xlu0 %630
      %v634 = vsel %vm507, %v629, 0
      %636 = vmatprep.subr.bf16.mxu0 0
      %637 = vmatpush1.bf16.msra.mxu0 0
      %638 = vmatprep.subr.bf16.mxu0 0
      %639 = vmatpush1.bf16.msra.mxu0 0
      %640 = vmatprep.subr.bf16.mxu0 0
      %641 = vmatpush1.bf16.msra.mxu0 0
      %642 = vmatprep.subr.bf16.mxu0 0
      %643 = vmatpush1.bf16.msra.mxu0 0
      %644 = vmatprep.subr.bf16.mxu0 0
      %645 = vmatpush1.bf16.msra.mxu0 0
      %646 = vmatprep.subr.bf16.mxu0 0
      %647 = vmatpush1.bf16.msra.mxu0 0
      %648 = vmatprep.subr.bf16.mxu0 0
      %649 = vmatpush1.bf16.msra.mxu0 0
      %650 = vmatprep.subr.bf16.mxu0 0
      %651 = vmatpush1.bf16.msra.mxu0 %v631
      %652 = vmatprep.subr.bf16.mxu0 0
      %653 = vmatpush2.bf16.msra.mxu0 0
      %654 = vmatprep.subr.bf16.mxu0 0
      %655 = vmatpush2.bf16.msra.mxu0 0
      %656 = vmatprep.subr.bf16.mxu0 0
      %657 = vmatpush2.bf16.msra.mxu0 0
      %658 = vmatprep.subr.bf16.mxu0 0
      %659 = vmatpush2.bf16.msra.mxu0 0
      %660 = vmatprep.subr.bf16.mxu0 0
      %661 = vmatpush2.bf16.msra.mxu0 0
      %662 = vmatprep.subr.bf16.mxu0 0
      %663 = vmatpush2.bf16.msra.mxu0 0
      %664 = vmatprep.subr.bf16.mxu0 0
      %665 = vmatpush2.bf16.msra.mxu0 0
      %666 = vmatprep.subr.bf16.mxu0 0
      %667 = vmatpush2.bf16.msra.mxu0 0
      %668 = vmatprep.mubr.bf16.mxu0 0
      %669 = vmatmul.mubr.bf16.gmra.mxu0 %v634
      %v670 = vpop.f32.mrf.mxu0
      %v671 = vadd.f32 0.0, %v670
      %v672 = vpop.f32.mrf.mxu0
      %v673 = vpop.f32.mrf.mxu0
      %v674 = vpop.f32.mrf.mxu0
      %675 = vdwg.mxu0
      %676 = vrot.lane.b32.xlu0 %v452, 112
      %v677 = vpop.permute.xlu0 %676
      %678 = vrot.lane.b32.xlu0 %v453, 112
      %v679 = vpop.permute.xlu0 %678
      %v681 = vsel %vm460, %v677, 0
      %v684 = vsel %vm460, %v679, 0
      %686 = vmatprep.subr.bf16.mxu0 0
      %687 = vmatpush1.bf16.xpose.msra.mxu0 0
      %688 = vmatprep.subr.bf16.mxu0 0
      %689 = vmatpush1.bf16.xpose.msra.mxu0 0
      %690 = vmatprep.subr.bf16.mxu0 0
      %691 = vmatpush1.bf16.xpose.msra.mxu0 0
      %692 = vmatprep.subr.bf16.mxu0 0
      %693 = vmatpush1.bf16.xpose.msra.mxu0 0
      %694 = vmatprep.subr.bf16.mxu0 0
      %695 = vmatpush1.bf16.xpose.msra.mxu0 0
      %696 = vmatprep.subr.bf16.mxu0 0
      %697 = vmatpush1.bf16.xpose.msra.mxu0 0
      %698 = vmatprep.subr.bf16.mxu0 0
      %699 = vmatpush1.bf16.xpose.msra.mxu0 0
      %700 = vmatprep.subr.bf16.mxu0 0
      %701 = vmatpush1.bf16.xpose.msra.mxu0 %v684
      %702 = vmatprep.subr.bf16.mxu0 0
      %703 = vmatpush2.bf16.xpose.msra.mxu0 0
      %704 = vmatprep.subr.bf16.mxu0 0
      %705 = vmatpush2.bf16.xpose.msra.mxu0 0
      %706 = vmatprep.subr.bf16.mxu0 0
      %707 = vmatpush2.bf16.xpose.msra.mxu0 0
      %708 = vmatprep.subr.bf16.mxu0 0
      %709 = vmatpush2.bf16.xpose.msra.mxu0 0
      %710 = vmatprep.subr.bf16.mxu0 0
      %711 = vmatpush2.bf16.xpose.msra.mxu0 0
      %712 = vmatprep.subr.bf16.mxu0 0
      %713 = vmatpush2.bf16.xpose.msra.mxu0 0
      %714 = vmatprep.subr.bf16.mxu0 0
      %715 = vmatpush2.bf16.xpose.msra.mxu0 0
      %716 = vmatprep.subr.bf16.mxu0 0
      %717 = vmatpush2.bf16.xpose.msra.mxu0 0
      %718 = vmatprep.mubr.bf16.mxu0 0
      %719 = vmatmul.mubr.bf16.gmra.mxu0 %v681
      %v720 = vpop.f32.mrf.mxu0
      %v721 = vadd.f32 %v458, %v720
      %v722 = vpop.f32.mrf.mxu0
      %v723 = vpop.f32.mrf.mxu0
      %v724 = vpop.f32.mrf.mxu0
      %725 = vdwg.mxu0
      %v726 = vsel %vm507, %v721, -inf
      %727 = vmax.xlane.f32.xlu0 %v726
      %v728 = vpop.xlane.xlu0 %727
      %v729 = vsub.f32 %v721, %v728
      %v730 = vmul.f32 %v729, 1.442695
      %v731 = vpow.pop %v730
      %v732 = vsel %vm507, %v731, 0.0
      %733 = vadd.xlane.f32.xlu0 %v732
      %v734 = vpop.xlane.xlu0 %733
      %v735 = vrcp.pop %v734
      %v736 = vmul.f32 %v731, %v735
      %v737 = vpack.c.bf16 %v736, %v736
      %738 = vrot.lane.b32.xlu0 %v453, 80
      %v739 = vpop.permute.xlu0 %738
      %v742 = vsel %vm507, %v737, 0
      %744 = vmatprep.subr.bf16.mxu0 0
      %745 = vmatpush1.bf16.msra.mxu0 0
      %746 = vmatprep.subr.bf16.mxu0 0
      %747 = vmatpush1.bf16.msra.mxu0 0
      %748 = vmatprep.subr.bf16.mxu0 0
      %749 = vmatpush1.bf16.msra.mxu0 0
      %750 = vmatprep.subr.bf16.mxu0 0
      %751 = vmatpush1.bf16.msra.mxu0 0
      %752 = vmatprep.subr.bf16.mxu0 0
      %753 = vmatpush1.bf16.msra.mxu0 0
      %754 = vmatprep.subr.bf16.mxu0 0
      %755 = vmatpush1.bf16.msra.mxu0 0
      %756 = vmatprep.subr.bf16.mxu0 0
      %757 = vmatpush1.bf16.msra.mxu0 0
      %758 = vmatprep.subr.bf16.mxu0 0
      %759 = vmatpush1.bf16.msra.mxu0 %v739
      %760 = vmatprep.subr.bf16.mxu0 0
      %761 = vmatpush2.bf16.msra.mxu0 0
      %762 = vmatprep.subr.bf16.mxu0 0
      %763 = vmatpush2.bf16.msra.mxu0 0
      %764 = vmatprep.subr.bf16.mxu0 0
      %765 = vmatpush2.bf16.msra.mxu0 0
      %766 = vmatprep.subr.bf16.mxu0 0
      %767 = vmatpush2.bf16.msra.mxu0 0
      %768 = vmatprep.subr.bf16.mxu0 0
      %769 = vmatpush2.bf16.msra.mxu0 0
      %770 = vmatprep.subr.bf16.mxu0 0
      %771 = vmatpush2.bf16.msra.mxu0 0
      %772 = vmatprep.subr.bf16.mxu0 0
      %773 = vmatpush2.bf16.msra.mxu0 0
      %774 = vmatprep.subr.bf16.mxu0 0
      %775 = vmatpush2.bf16.msra.mxu0 0
      %776 = vmatprep.mubr.bf16.mxu0 0
      %777 = vmatmul.mubr.bf16.gmra.mxu0 %v742
      %v778 = vpop.f32.mrf.mxu0
      %v779 = vadd.f32 0.0, %v778
      %v780 = vpop.f32.mrf.mxu0
      %v781 = vpop.f32.mrf.mxu0
      %v782 = vpop.f32.mrf.mxu0
      %783 = vdwg.mxu0
      %784 = vrot.lane.b32.xlu0 %v452, 104
      %v785 = vpop.permute.xlu0 %784
      %786 = vrot.lane.b32.xlu0 %v453, 104
      %v787 = vpop.permute.xlu0 %786
      %v789 = vsel %vm460, %v785, 0
      %v792 = vsel %vm460, %v787, 0
      %794 = vmatprep.subr.bf16.mxu0 0
      %795 = vmatpush1.bf16.xpose.msra.mxu0 0
      %796 = vmatprep.subr.bf16.mxu0 0
      %797 = vmatpush1.bf16.xpose.msra.mxu0 0
      %798 = vmatprep.subr.bf16.mxu0 0
      %799 = vmatpush1.bf16.xpose.msra.mxu0 0
      %800 = vmatprep.subr.bf16.mxu0 0
      %801 = vmatpush1.bf16.xpose.msra.mxu0 0
      %802 = vmatprep.subr.bf16.mxu0 0
      %803 = vmatpush1.bf16.xpose.msra.mxu0 0
      %804 = vmatprep.subr.bf16.mxu0 0
      %805 = vmatpush1.bf16.xpose.msra.mxu0 0
      %806 = vmatprep.subr.bf16.mxu0 0
      %807 = vmatpush1.bf16.xpose.msra.mxu0 0
      %808 = vmatprep.subr.bf16.mxu0 0
      %809 = vmatpush1.bf16.xpose.msra.mxu0 %v792
      %810 = vmatprep.subr.bf16.mxu0 0
      %811 = vmatpush2.bf16.xpose.msra.mxu0 0
      %812 = vmatprep.subr.bf16.mxu0 0
      %813 = vmatpush2.bf16.xpose.msra.mxu0 0
      %814 = vmatprep.subr.bf16.mxu0 0
      %815 = vmatpush2.bf16.xpose.msra.mxu0 0
      %816 = vmatprep.subr.bf16.mxu0 0
      %817 = vmatpush2.bf16.xpose.msra.mxu0 0
      %818 = vmatprep.subr.bf16.mxu0 0
      %819 = vmatpush2.bf16.xpose.msra.mxu0 0
      %820 = vmatprep.subr.bf16.mxu0 0
      %821 = vmatpush2.bf16.xpose.msra.mxu0 0
      %822 = vmatprep.subr.bf16.mxu0 0
      %823 = vmatpush2.bf16.xpose.msra.mxu0 0
      %824 = vmatprep.subr.bf16.mxu0 0
      %825 = vmatpush2.bf16.xpose.msra.mxu0 0
      %826 = vmatprep.mubr.bf16.mxu0 0
      %827 = vmatmul.mubr.bf16.gmra.mxu0 %v789
      %v828 = vpop.f32.mrf.mxu0
      %v829 = vadd.f32 %v458, %v828
      %v830 = vpop.f32.mrf.mxu0
      %v831 = vpop.f32.mrf.mxu0
      %v832 = vpop.f32.mrf.mxu0
      %833 = vdwg.mxu0
      %v834 = vsel %vm507, %v829, -inf
      %835 = vmax.xlane.f32.xlu0 %v834
      %v836 = vpop.xlane.xlu0 %835
      %v837 = vsub.f32 %v829, %v836
      %v838 = vmul.f32 %v837, 1.442695
      %v839 = vpow.pop %v838
      %v840 = vsel %vm507, %v839, 0.0
      %841 = vadd.xlane.f32.xlu0 %v840
      %v842 = vpop.xlane.xlu0 %841
      %v843 = vrcp.pop %v842
      %v844 = vmul.f32 %v839, %v843
      %v845 = vpack.c.bf16 %v844, %v844
      %846 = vrot.lane.b32.xlu0 %v453, 72
      %v847 = vpop.permute.xlu0 %846
      %v850 = vsel %vm507, %v845, 0
      %852 = vmatprep.subr.bf16.mxu0 0
      %853 = vmatpush1.bf16.msra.mxu0 0
      %854 = vmatprep.subr.bf16.mxu0 0
      %855 = vmatpush1.bf16.msra.mxu0 0
      %856 = vmatprep.subr.bf16.mxu0 0
      %857 = vmatpush1.bf16.msra.mxu0 0
      %858 = vmatprep.subr.bf16.mxu0 0
      %859 = vmatpush1.bf16.msra.mxu0 0
      %860 = vmatprep.subr.bf16.mxu0 0
      %861 = vmatpush1.bf16.msra.mxu0 0
      %862 = vmatprep.subr.bf16.mxu0 0
      %863 = vmatpush1.bf16.msra.mxu0 0
      %864 = vmatprep.subr.bf16.mxu0 0
      %865 = vmatpush1.bf16.msra.mxu0 0
      %866 = vmatprep.subr.bf16.mxu0 0
      %867 = vmatpush1.bf16.msra.mxu0 %v847
      %868 = vmatprep.subr.bf16.mxu0 0
      %869 = vmatpush2.bf16.msra.mxu0 0
      %870 = vmatprep.subr.bf16.mxu0 0
      %871 = vmatpush2.bf16.msra.mxu0 0
      %872 = vmatprep.subr.bf16.mxu0 0
      %873 = vmatpush2.bf16.msra.mxu0 0
      %874 = vmatprep.subr.bf16.mxu0 0
      %875 = vmatpush2.bf16.msra.mxu0 0
      %876 = vmatprep.subr.bf16.mxu0 0
      %877 = vmatpush2.bf16.msra.mxu0 0
      %878 = vmatprep.subr.bf16.mxu0 0
      %879 = vmatpush2.bf16.msra.mxu0 0
      %880 = vmatprep.subr.bf16.mxu0 0
      %881 = vmatpush2.bf16.msra.mxu0 0
      %882 = vmatprep.subr.bf16.mxu0 0
      %883 = vmatpush2.bf16.msra.mxu0 0
      %884 = vmatprep.mubr.bf16.mxu0 0
      %885 = vmatmul.mubr.bf16.gmra.mxu0 %v850
      %v886 = vpop.f32.mrf.mxu0
      %v887 = vadd.f32 0.0, %v886
      %v888 = vpop.f32.mrf.mxu0
      %v889 = vpop.f32.mrf.mxu0
      %v890 = vpop.f32.mrf.mxu0
      %891 = vdwg.mxu0
      %893 = vrot.lane.b32.xlu0 %v671, 8
      %v894 = vpop.permute.xlu0 %893
      %897 = vrot.lane.b32.xlu0 %v779, 16
      %v898 = vpop.permute.xlu0 %897
      %901 = vrot.lane.b32.xlu0 %v887, 24
      %v902 = vpop.permute.xlu0 %901
      %v904 = vsel %vm460, %v562, %v894
      %v905 = vsel %vm507, %v904, %v898
      %vm906 = vcmask 195584
      %v907 = vsel %vm906, %v905, %v902
      %908 = vst.msk [vmem:[%s307] sm:$0xff] %vm336, %v907
      %p909 = scmp.lt.s32.totalorder %s18, 1
      %s910 = scalar_select %p909, %s18, 1
      %s911 = smul.addr %s910, 8
      %s912 = scalar_lea.vmem %s7, %s911
      // Predicated region
      $region49: #{run.5} parent=47 // pred_check
        %p913 = pneg %p198
      $region50: #{run.5} parent=47 // pred_check_branch
        %915 = sbr.rel (%p913) target = $region52
      $region51: #{run.5} parent=47 // pred_region
        _
      $region52: #{run.5} parent=47 // pred_fallthru
        _
    $region48: #{run.5} parent=5 // pred_fallthru
      _
    %p916 = scmp.le.s32.totalorder 2, %s13
    // Predicated region
    $region53: #{run.5} parent=5 // pred_check
      %p917 = pneg %p916
    $region54: #{run.5} parent=5 // pred_check_branch
      %919 = sbr.rel (%p917) target = $region56
    $region55: #{run.5} parent=5 // pred_region
      %s920 = ssub.s32 %s13, 2
      // Predicated region
      $region57: #{run.5} parent=55 // pred_check
        %p921 = pneg %p204
      $region58: #{run.5} parent=55 // pred_check_branch
        %923 = sbr.rel (%p921) target = $region60
      $region59: #{run.5} parent=55 // pred_region
        %p924 = scmp.lt.s32.totalorder %s19, 1
        %s925 = scalar_select %p924, %s19, 1
        %s926 = smul.addr %s925, 8
        %s927 = scalar_lea.vmem %s7, %s926
      $region60: #{run.5} parent=55 // pred_fallthru
        _
    $region56: #{run.5} parent=5 // pred_fallthru
      _
  $region6: #{run.5} parent=0 // loop_footer
    %s17 = sadd.s32 1, %s13
  $region7: #{run.5} parent=0 // loop_footer_branch
    %12 = sbr.rel target = $region3
  $region8: #{run.5} parent=0 // loop_exit
    _

// kernel: run.4
$region0: #{run.4}
  #allocation0 [shape = 'u32[]', space=smem, size = 0x4, offset = 0x4, fixed_abs, tag = 'smem constant byte address 0x4 - core index']
  #allocation1 [shape = 'u32[144,128]{1,0:T(1,128)}', space=vmem, size = 0x12000, scoped, tag = 'internal scratch']
  %s0 = inlined_call_operand.vmem [shape: bf16[2,8,32], index: 0, kind: input, shape index: {}]
  %s1 = inlined_call_operand.vmem [shape: f32[2,1,8], index: 1, kind: input, shape index: {}]
  %s2 = inlined_call_operand.vmem [shape: bf16[1,32,32], index: 2, kind: input, shape index: {}]
  %s3 = inlined_call_operand.vmem [shape: f32[1,1,32], index: 3, kind: input, shape index: {}]
  %s4 = inlined_call_operand.vmem [shape: bf16[1,32,64], index: 4, kind: input, shape index: {}]
  %s5 = inlined_call_operand.vmem [shape: f32[1,1,64], index: 5, kind: input, shape index: {}]
  %s6 = inlined_call_operand.vmem [shape: f32[2,8,32], index: 6, kind: output, shape index: {}]
  %s7 = sld [smem:[#allocation0]]
  $region57: #{run.4} parent=0
    _
  %s9 = ssub.s32 1, %s7
  %s10 = scalar_select 0, %s9, %s7
  loop: start=0, step=1, limit=4
  $region2: #{run.4} parent=0 // loop_pre_header
    _
  $region3: #{run.4} parent=0 // loop_header
    %s12 = sphi 0, %s16
    %p13 = scmp.ge.s32.totalorder %s12, 4
    %s22 = sphi 0, %s24
    %s25 = sphi 0, %s22
    %s26 = sphi 0, %s25
    %s42 = sphi 0, %s26
    %s48 = sphi 0, %s50
    %s51 = sphi 0, %s48
    %s52 = sphi 0, %s51
    %s68 = sphi 0, %s52
    %s72 = sphi 0, %s72
    %s74 = sphi 0, %s72
    %s75 = sphi 0, %s74
    %s89 = sphi 0, %s75
    %s93 = sphi 0, %s93
    %s95 = sphi 0, %s93
    %s96 = sphi 0, %s95
    %s110 = sphi 0, %s96
    %s114 = sphi 0, %s114
    %s116 = sphi 0, %s114
    %s117 = sphi 0, %s116
    %s131 = sphi 0, %s117
    %s135 = sphi 0, %s135
    %s137 = sphi 0, %s135
    %s138 = sphi 0, %s137
    %s152 = sphi 0, %s138
    %s158 = sphi 0, %s160
    %s161 = sphi 0, %s158
    %s162 = sphi 0, %s161
    %s178 = sphi 0, %s162
  $region4: #{run.4} parent=0 // loop_header_branch
    %15 = sbr.rel (%p13) target = $region8
  $region5: #{run.4} parent=0 // loop_body
    %s17 = ssub.s32 %s12, 1
    %s18 = ssub.s32 %s12, 2
    %s19 = sadd.s32 %s12, 1
    %s20 = ssub.s32 %s12, %s19
    %p21 = scmp.eq.s32.totalorder %s20, 0
    %s23 = sadd.s32 %s22, 1
    %s24 = scalar_select %p21, %s22, %s23
    %p27 = pneg %p21
    %p28 = scmp.eq.s32.totalorder %s12, 1
    %p29 = por %p27, %p28
    %p30 = scmp.ne.s32.totalorder %s22, %s25
    %p31 = scmp.eq.s32.totalorder %s12, 0
    %p32 = por %p30, %p31
    %p33 = scmp.ne.s32.totalorder %s22, %s25
    %p34 = scmp.eq.s32.totalorder %s17, 1
    %p35 = por %p33, %p34
    %p36 = scmp.ne.s32.totalorder %s25, %s26
    %p37 = scmp.eq.s32.totalorder %s17, 0
    %p38 = por %p36, %p37
    %p39 = scmp.ne.s32.totalorder %s25, %s26
    %p40 = scmp.eq.s32.totalorder %s18, 1
    %p41 = por %p39, %p40
    %p43 = scmp.ne.s32.totalorder %s26, %s42
    %p44 = scmp.eq.s32.totalorder %s18, 0
    %p45 = por %p43, %p44
    %s46 = ssub.s32 %s12, %s19
    %p47 = scmp.eq.s32.totalorder %s46, 0
    %s49 = sadd.s32 %s48, 1
    %s50 = scalar_select %p47, %s48, %s49
    %p53 = pneg %p47
    %p54 = scmp.eq.s32.totalorder %s12, 1
    %p55 = por %p53, %p54
    %p56 = scmp.ne.s32.totalorder %s48, %s51
    %p57 = scmp.eq.s32.totalorder %s12, 0
    %p58 = por %p56, %p57
    %p59 = scmp.ne.s32.totalorder %s48, %s51
    %p60 = scmp.eq.s32.totalorder %s17, 1
    %p61 = por %p59, %p60
    %p62 = scmp.ne.s32.totalorder %s51, %s52
    %p63 = scmp.eq.s32.totalorder %s17, 0
    %p64 = por %p62, %p63
    %p65 = scmp.ne.s32.totalorder %s51, %s52
    %p66 = scmp.eq.s32.totalorder %s18, 1
    %p67 = por %p65, %p66
    %p69 = scmp.ne.s32.totalorder %s52, %s68
    %p70 = scmp.eq.s32.totalorder %s18, 0
    %p71 = por %p69, %p70
    %s73 = sadd.s32 %s72, 1
    %p76 = scmp.eq.s32.totalorder %s12, 1
    %p77 = scmp.ne.s32.totalorder %s72, %s74
    %p78 = scmp.eq.s32.totalorder %s12, 0
    %p79 = por %p77, %p78
    %p80 = scmp.ne.s32.totalorder %s72, %s74
    %p81 = scmp.eq.s32.totalorder %s17, 1
    %p82 = por %p80, %p81
    %p83 = scmp.ne.s32.totalorder %s74, %s75
    %p84 = scmp.eq.s32.totalorder %s17, 0
    %p85 = por %p83, %p84
    %p86 = scmp.ne.s32.totalorder %s74, %s75
    %p87 = scmp.eq.s32.totalorder %s18, 1
    %p88 = por %p86, %p87
    %p90 = scmp.ne.s32.totalorder %s75, %s89
    %p91 = scmp.eq.s32.totalorder %s18, 0
    %p92 = por %p90, %p91
    %s94 = sadd.s32 %s93, 1
    %p97 = scmp.eq.s32.totalorder %s12, 1
    %p98 = scmp.ne.s32.totalorder %s93, %s95
    %p99 = scmp.eq.s32.totalorder %s12, 0
    %p100 = por %p98, %p99
    %p101 = scmp.ne.s32.totalorder %s93, %s95
    %p102 = scmp.eq.s32.totalorder %s17, 1
    %p103 = por %p101, %p102
    %p104 = scmp.ne.s32.totalorder %s95, %s96
    %p105 = scmp.eq.s32.totalorder %s17, 0
    %p106 = por %p104, %p105
    %p107 = scmp.ne.s32.totalorder %s95, %s96
    %p108 = scmp.eq.s32.totalorder %s18, 1
    %p109 = por %p107, %p108
    %p111 = scmp.ne.s32.totalorder %s96, %s110
    %p112 = scmp.eq.s32.totalorder %s18, 0
    %p113 = por %p111, %p112
    %s115 = sadd.s32 %s114, 1
    %p118 = scmp.eq.s32.totalorder %s12, 1
    %p119 = scmp.ne.s32.totalorder %s114, %s116
    %p120 = scmp.eq.s32.totalorder %s12, 0
    %p121 = por %p119, %p120
    %p122 = scmp.ne.s32.totalorder %s114, %s116
    %p123 = scmp.eq.s32.totalorder %s17, 1
    %p124 = por %p122, %p123
    %p125 = scmp.ne.s32.totalorder %s116, %s117
    %p126 = scmp.eq.s32.totalorder %s17, 0
    %p127 = por %p125, %p126
    %p128 = scmp.ne.s32.totalorder %s116, %s117
    %p129 = scmp.eq.s32.totalorder %s18, 1
    %p130 = por %p128, %p129
    %p132 = scmp.ne.s32.totalorder %s117, %s131
    %p133 = scmp.eq.s32.totalorder %s18, 0
    %p134 = por %p132, %p133
    %s136 = sadd.s32 %s135, 1
    %p139 = scmp.eq.s32.totalorder %s12, 1
    %p140 = scmp.ne.s32.totalorder %s135, %s137
    %p141 = scmp.eq.s32.totalorder %s12, 0
    %p142 = por %p140, %p141
    %p143 = scmp.ne.s32.totalorder %s135, %s137
    %p144 = scmp.eq.s32.totalorder %s17, 1
    %p145 = por %p143, %p144
    %p146 = scmp.ne.s32.totalorder %s137, %s138
    %p147 = scmp.eq.s32.totalorder %s17, 0
    %p148 = por %p146, %p147
    %p149 = scmp.ne.s32.totalorder %s137, %s138
    %p150 = scmp.eq.s32.totalorder %s18, 1
    %p151 = por %p149, %p150
    %p153 = scmp.ne.s32.totalorder %s138, %s152
    %p154 = scmp.eq.s32.totalorder %s18, 0
    %p155 = por %p153, %p154
    %s156 = ssub.s32 %s12, %s19
    %p157 = scmp.eq.s32.totalorder %s156, 0
    %s159 = sadd.s32 %s158, 1
    %s160 = scalar_select %p157, %s158, %s159
    %p163 = pneg %p157
    %p164 = scmp.eq.s32.totalorder %s12, 1
    %p165 = por %p163, %p164
    %p166 = scmp.ne.s32.totalorder %s158, %s161
    %p167 = scmp.eq.s32.totalorder %s12, 0
    %p168 = por %p166, %p167
    %p169 = scmp.ne.s32.totalorder %s158, %s161
    %p170 = scmp.eq.s32.totalorder %s17, 1
    %p171 = por %p169, %p170
    %p172 = scmp.ne.s32.totalorder %s161, %s162
    %p173 = scmp.eq.s32.totalorder %s17, 0
    %p174 = por %p172, %p173
    %p175 = scmp.ne.s32.totalorder %s161, %s162
    %p176 = scmp.eq.s32.totalorder %s18, 1
    %p177 = por %p175, %p176
    %p179 = scmp.ne.s32.totalorder %s162, %s178
    %p180 = scmp.eq.s32.totalorder %s18, 0
    %p181 = por %p179, %p180
    %p182 = scmp.le.s32.totalorder 1, %s12
    %p183 = scmp.lt.s32.totalorder %s12, 3
    %p184 = pnand %p182, %p183
    %p185 = pneg %p184
    // Predicated region
    $region9: #{run.4} parent=5 // pred_check
      _
    $region10: #{run.4} parent=5 // pred_check_branch
      %187 = sbr.rel (%p184) target = $region12
    $region11: #{run.4} parent=5 // pred_region
      %s188 = ssub.s32 %s12, 1
      // Predicated region
      $region13: #{run.4} parent=11 // pred_check
        %p189 = pneg %p85
      $region14: #{run.4} parent=11 // pred_check_branch
        %191 = sbr.rel (%p189) target = $region16
      $region15: #{run.4} parent=11 // pred_region
        _
      $region16: #{run.4} parent=11 // pred_fallthru
        _
      // Predicated region
      $region17: #{run.4} parent=11 // pred_check
        %p192 = pneg %p106
      $region18: #{run.4} parent=11 // pred_check_branch
        %194 = sbr.rel (%p192) target = $region20
      $region19: #{run.4} parent=11 // pred_region
        _
      $region20: #{run.4} parent=11 // pred_fallthru
        _
      // Predicated region
      $region21: #{run.4} parent=11 // pred_check
        %p195 = pneg %p127
      $region22: #{run.4} parent=11 // pred_check_branch
        %197 = sbr.rel (%p195) target = $region24
      $region23: #{run.4} parent=11 // pred_region
        _
      $region24: #{run.4} parent=11 // pred_fallthru
        _
      // Predicated region
      $region25: #{run.4} parent=11 // pred_check
        %p198 = pneg %p148
      $region26: #{run.4} parent=11 // pred_check_branch
        %200 = sbr.rel (%p198) target = $region28
      $region27: #{run.4} parent=11 // pred_region
        _
      $region28: #{run.4} parent=11 // pred_fallthru
        _
    $region12: #{run.4} parent=5 // pred_fallthru
      _
    %p201 = scmp.lt.s32.totalorder %s12, 2
    // Predicated region
    $region29: #{run.4} parent=5 // pred_check
      %p202 = pneg %p201
    $region30: #{run.4} parent=5 // pred_check_branch
      %204 = sbr.rel (%p202) target = $region32
    $region31: #{run.4} parent=5 // pred_region
      // Predicated region
      $region33: #{run.4} parent=31 // pred_check
        %p205 = pneg %p32
      $region34: #{run.4} parent=31 // pred_check_branch
        %207 = sbr.rel (%p205) target = $region36
      $region35: #{run.4} parent=31 // pred_region
        %p208 = scmp.lt.s32.totalorder %s12, 1
        %s209 = scalar_select %p208, %s12, 1
        %s210 = smul.addr %s209, 4
        %s211 = scalar_lea.vmem %s0, %s210
      $region36: #{run.4} parent=31 // pred_fallthru
        _
      // Predicated region
      $region37: #{run.4} parent=31 // pred_check
        %p212 = pneg %p58
      $region38: #{run.4} parent=31 // pred_check_branch
        %214 = sbr.rel (%p212) target = $region40
      $region39: #{run.4} parent=31 // pred_region
        %p215 = scmp.lt.s32.totalorder %s12, 1
        %s216 = scalar_select %p215, %s12, 1
        %s217 = scalar_lea.vmem %s1, %s216
      $region40: #{run.4} parent=31 // pred_fallthru
        _
    $region32: #{run.4} parent=5 // pred_fallthru
      _
    %p218 = scmp.le.s32.totalorder 1, %s12
    %p219 = scmp.lt.s32.totalorder %s12, 3
    %p220 = pnand %p218, %p219
    %p221 = pneg %p220
    // Predicated region
    $region41: #{run.4} parent=5 // pred_check
      _
    $region42: #{run.4} parent=5 // pred_check_branch
      %223 = sbr.rel (%p220) target = $region44
    $region43: #{run.4} parent=5 // pred_region
      %s224 = ssub.s32 %s12, 1
      %p225 = scmp.lt.s32.totalorder %s17, 1
      %s226 = scalar_select %p225, %s17, 1
      %s227 = smul.addr %s226, 4
      %s228 = scalar_lea.vmem %s0, %s227
      %p229 = pneg %p38
      %p230 = pneg %p35
      %p231 = scmp.lt.s32.totalorder %s17, 1
      %s232 = scalar_select %p231, %s17, 1
      %s233 = scalar_lea.vmem %s1, %s232
      %p234 = pneg %p64
      %p235 = pneg %p61
      %p236 = pneg %p85
      %p237 = pneg %p82
      %p238 = pneg %p106
      %p239 = pneg %p103
      %p240 = pneg %p127
      %p241 = pneg %p124
      %p242 = pneg %p148
      %p243 = pneg %p145
      %p244 = pneg %p174
      %p245 = pneg %p171
      %p246 = scmp.lt.s32.totalorder %s17, 1
      %s247 = scalar_select %p246, %s17, 1
      %s248 = smul.addr %s247, 8
      %s249 = scalar_lea.vmem %s6, %s248
      %p250 = scmp.lt.s32.totalorder %s17, 1
      %s251 = scalar_select %p250, %s17, 1
      %s252 = smul.addr %s251, 4
      %s253 = scalar_lea.vmem %s0, %s252
      %p254 = scmp.lt.s32.totalorder %s17, 1
      %s255 = scalar_select %p254, %s17, 1
      %s256 = scalar_lea.vmem %s1, %s255
      %p257 = scmp.lt.s32.totalorder %s17, 1
      %s258 = scalar_select %p257, %s17, 1
      %s259 = smul.addr %s258, 8
      %s260 = scalar_lea.vmem %s6, %s259
      %v262 = vld [vmem:[%s253] sm:$0xf]
      %v263 = vld [vmem:[%s256] sm:$0x1]
      %v264 = vld [vmem:[%s2] sm:$0xf]
      %v265 = vld [vmem:[%s2 + $0x4] sm:$0xf]
      %v266 = vld [vmem:[%s2 + $0x8] sm:$0xf]
      %v267 = vld [vmem:[%s2 + $0xc] sm:$0xf]
      %v268 = vld [vmem:[%s3] sm:$0x1]
      %v270 = vlaneseq
      %v271 = vshrl.u32 %v270, 7
      %v272 = vsub.s32 0, %v271
      %v273 = vrot.slane %v268, %v272
      %v279 = vunpack.c.l.b16 %v264
      %v280 = vunpack.c.l.b16 %v265
      %v281 = vunpack.c.l.b16 %v266
      %v282 = vunpack.c.l.b16 %v267
      %v283 = vpack.c.b16 %v280, %v279
      %v284 = vpack.c.b16 %v282, %v281
      %vm287 = vcmask 261120
      %v289 = vsel %vm287, %v262, 0
      %291 = vmatprep.subr.bf16.mxu0 0
      %292 = vmatpush1.bf16.msra.mxu0 0
      %293 = vmatprep.subr.bf16.mxu0 0
      %294 = vmatpush1.bf16.msra.mxu0 0
      %295 = vmatprep.subr.bf16.mxu0 0
      %296 = vmatpush1.bf16.msra.mxu0 0
      %297 = vmatprep.subr.bf16.mxu0 0
      %298 = vmatpush1.bf16.msra.mxu0 0
      %299 = vmatprep.subr.bf16.mxu0 0
      %300 = vmatpush1.bf16.msra.mxu0 0
      %301 = vmatprep.subr.bf16.mxu0 0
      %302 = vmatpush1.bf16.msra.mxu0 0
      %303 = vmatprep.subr.bf16.mxu0 0
      %304 = vmatpush1.bf16.msra.mxu0 %v284
      %305 = vmatprep.subr.bf16.mxu0 0
      %306 = vmatpush1.bf16.msra.mxu0 %v283
      %307 = vmatprep.subr.bf16.mxu0 0
      %308 = vmatpush2.bf16.msra.mxu0 0
      %309 = vmatprep.subr.bf16.mxu0 0
      %310 = vmatpush2.bf16.msra.mxu0 0
      %311 = vmatprep.subr.bf16.mxu0 0
      %312 = vmatpush2.bf16.msra.mxu0 0
      %313 = vmatprep.subr.bf16.mxu0 0
      %314 = vmatpush2.bf16.msra.mxu0 0
      %315 = vmatprep.subr.bf16.mxu0 0
      %316 = vmatpush2.bf16.msra.mxu0 0
      %317 = vmatprep.subr.bf16.mxu0 0
      %318 = vmatpush2.bf16.msra.mxu0 0
      %319 = vmatprep.subr.bf16.mxu0 0
      %320 = vmatpush2.bf16.msra.mxu0 0
      %321 = vmatprep.subr.bf16.mxu0 0
      %322 = vmatpush2.bf16.msra.mxu0 0
      %323 = vmatprep.mubr.bf16.mxu0 0
      %324 = vmatmul.mubr.bf16.gmra.mxu0 %v289
      %v325 = vpop.f32.mrf.mxu0
      %v326 = vadd.f32 %v273, %v325
      %v327 = vpop.f32.mrf.mxu0
      %v328 = vpop.f32.mrf.mxu0
      %v329 = vpop.f32.mrf.mxu0
      %330 = vdwg.mxu0
      %v331 = vld [vmem:[%s4] sm:$0xf]
      %v332 = vld [vmem:[%s4 + $0x4] sm:$0xf]
      %v333 = vld [vmem:[%s4 + $0x8] sm:$0xf]
      %v334 = vld [vmem:[%s4 + $0xc] sm:$0xf]
      %v335 = vld [vmem:[%s5] sm:$0x1]
      %v337 = vlaneseq
      %v338 = vshrl.u32 %v337, 7
      %v339 = vsub.s32 0, %v338
      %v340 = vrot.slane %v335, %v339
      %v346 = vunpack.c.l.b16 %v331
      %v347 = vunpack.c.l.b16 %v332
      %v348 = vunpack.c.l.b16 %v333
      %v349 = vunpack.c.l.b16 %v334
      %v350 = vpack.c.b16 %v347, %v346
      %v351 = vpack.c.b16 %v349, %v348
      %354 = vmatprep.subr.bf16.mxu0 0
      %355 = vmatpush1.bf16.msra.mxu0 0
      %356 = vmatprep.subr.bf16.mxu0 0
      %357 = vmatpush1.bf16.msra.mxu0 0
      %358 = vmatprep.subr.bf16.mxu0 0
      %359 = vmatpush1.bf16.msra.mxu0 0
      %360 = vmatprep.subr.bf16.mxu0 0
      %361 = vmatpush1.bf16.msra.mxu0 0
      %362 = vmatprep.subr.bf16.mxu0 0
      %363 = vmatpush1.bf16.msra.mxu0 0
      %364 = vmatprep.subr.bf16.mxu0 0
      %365 = vmatpush1.bf16.msra.mxu0 0
      %366 = vmatprep.subr.bf16.mxu0 0
      %367 = vmatpush1.bf16.msra.mxu0 %v351
      %368 = vmatprep.subr.bf16.mxu0 0
      %369 = vmatpush1.bf16.msra.mxu0 %v350
      %370 = vmatprep.subr.bf16.mxu0 0
      %371 = vmatpush2.bf16.msra.mxu0 0
      %372 = vmatprep.subr.bf16.mxu0 0
      %373 = vmatpush2.bf16.msra.mxu0 0
      %374 = vmatprep.subr.bf16.mxu0 0
      %375 = vmatpush2.bf16.msra.mxu0 0
      %376 = vmatprep.subr.bf16.mxu0 0
      %377 = vmatpush2.bf16.msra.mxu0 0
      %378 = vmatprep.subr.bf16.mxu0 0
      %379 = vmatpush2.bf16.msra.mxu0 0
      %380 = vmatprep.subr.bf16.mxu0 0
      %381 = vmatpush2.bf16.msra.mxu0 0
      %382 = vmatprep.subr.bf16.mxu0 0
      %383 = vmatpush2.bf16.msra.mxu0 0
      %384 = vmatprep.subr.bf16.mxu0 0
      %385 = vmatpush2.bf16.msra.mxu0 0
      %386 = vmatprep.mubr.bf16.mxu0 0
      %387 = vmatmul.mubr.bf16.gmra.mxu0 %v289
      %v388 = vpop.f32.mrf.mxu0
      %v389 = vadd.f32 %v340, %v388
      %v390 = vpop.f32.mrf.mxu0
      %v391 = vpop.f32.mrf.mxu0
      %v392 = vpop.f32.mrf.mxu0
      %393 = vdwg.mxu0
      %v394 = vpack.c.bf16 %v326, %v326
      %v395 = vpack.c.bf16 %v389, %v389
      %v397 = vlaneseq
      %v398 = vshrl.u32 %v397, 7
      %v399 = vsub.s32 0, %v398
      %v400 = vrot.slane %v263, %v399
      %vm402 = vcmask 64512
      %v404 = vsel %vm402, %v394, 0
      %v407 = vsel %vm402, %v395, 0
      %409 = vmatprep.subr.bf16.mxu0 0
      %410 = vmatpush1.bf16.xpose.msra.mxu0 0
      %411 = vmatprep.subr.bf16.mxu0 0
      %412 = vmatpush1.bf16.xpose.msra.mxu0 0
      %413 = vmatprep.subr.bf16.mxu0 0
      %414 = vmatpush1.bf16.xpose.msra.mxu0 0
      %415 = vmatprep.subr.bf16.mxu0 0
      %416 = vmatpush1.bf16.xpose.msra.mxu0 0
      %417 = vmatprep.subr.bf16.mxu0 0
      %418 = vmatpush1.bf16.xpose.msra.mxu0 0
      %419 = vmatprep.subr.bf16.mxu0 0
      %420 = vmatpush1.bf16.xpose.msra.mxu0 0
      %421 = vmatprep.subr.bf16.mxu0 0
      %422 = vmatpush1.bf16.xpose.msra.mxu0 0
      %423 = vmatprep.subr.bf16.mxu0 0
      %424 = vmatpush1.bf16.xpose.msra.mxu0 %v407
      %425 = vmatprep.subr.bf16.mxu0 0
      %426 = vmatpush2.bf16.xpose.msra.mxu0 0
      %427 = vmatprep.subr.bf16.mxu0 0
      %428 = vmatpush2.bf16.xpose.msra.mxu0 0
      %429 = vmatprep.subr.bf16.mxu0 0
      %430 = vmatpush2.bf16.xpose.msra.mxu0 0
      %431 = vmatprep.subr.bf16.mxu0 0
      %432 = vmatpush2.bf16.xpose.msra.mxu0 0
      %433 = vmatprep.subr.bf16.mxu0 0
      %434 = vmatpush2.bf16.xpose.msra.mxu0 0
      %435 = vmatprep.subr.bf16.mxu0 0
      %436 = vmatpush2.bf16.xpose.msra.mxu0 0
      %437 = vmatprep.subr.bf16.mxu0 0
      %438 = vmatpush2.bf16.xpose.msra.mxu0 0
      %439 = vmatprep.subr.bf16.mxu0 0
      %440 = vmatpush2.bf16.xpose.msra.mxu0 0
      %441 = vmatprep.mubr.bf16.mxu0 0
      %442 = vmatmul.mubr.bf16.gmra.mxu0 %v404
      %v443 = vpop.f32.mrf.mxu0
      %v444 = vadd.f32 %v400, %v443
      %v445 = vpop.f32.mrf.mxu0
      %v446 = vpop.f32.mrf.mxu0
      %v447 = vpop.f32.mrf.mxu0
      %448 = vdwg.mxu0
      %v449 = vsel %vm402, %v444, -inf
      %450 = vmax.xlane.f32.xlu0 %v449
      %v451 = vpop.xlane.xlu0 %450
      %v452 = vsub.f32 %v444, %v451
      %v453 = vmul.f32 %v452, 1.442695
      %v454 = vpow.pop %v453
      %v455 = vsel %vm402, %v454, 0.0
      %456 = vadd.xlane.f32.xlu0 %v455
      %v457 = vpop.xlane.xlu0 %456
      %v458 = vrcp.pop %v457
      %v459 = vmul.f32 %v454, %v458
      %v460 = vpack.c.bf16 %v459, %v459
      %462 = vrot.lane.b32.xlu0 %v395, 96
      %v463 = vpop.permute.xlu0 %462
      %v465 = vsel %vm402, %v460, 0
      %vm467 = vcmask 1043456
      %v469 = vsel %vm467, %v463, 0
      %471 = vmatprep.subr.bf16.mxu0 0
      %472 = vmatpush1.bf16.msra.mxu0 0
      %473 = vmatprep.subr.bf16.mxu0 0
      %474 = vmatpush1.bf16.msra.mxu0 0
      %475 = vmatprep.subr.bf16.mxu0 0
      %476 = vmatpush1.bf16.msra.mxu0 0
      %477 = vmatprep.subr.bf16.mxu0 0
      %478 = vmatpush1.bf16.msra.mxu0 0
      %479 = vmatprep.subr.bf16.mxu0 0
      %480 = vmatpush1.bf16.msra.mxu0 0
      %481 = vmatprep.subr.bf16.mxu0 0
      %482 = vmatpush1.bf16.msra.mxu0 0
      %483 = vmatprep.subr.bf16.mxu0 0
      %484 = vmatpush1.bf16.msra.mxu0 0
      %485 = vmatprep.subr.bf16.mxu0 0
      %486 = vmatpush1.bf16.msra.mxu0 %v469
      %487 = vmatprep.subr.bf16.mxu0 0
      %488 = vmatpush2.bf16.msra.mxu0 0
      %489 = vmatprep.subr.bf16.mxu0 0
      %490 = vmatpush2.bf16.msra.mxu0 0
      %491 = vmatprep.subr.bf16.mxu0 0
      %492 = vmatpush2.bf16.msra.mxu0 0
      %493 = vmatprep.subr.bf16.mxu0 0
      %494 = vmatpush2.bf16.msra.mxu0 0
      %495 = vmatprep.subr.bf16.mxu0 0
      %496 = vmatpush2.bf16.msra.mxu0 0
      %497 = vmatprep.subr.bf16.mxu0 0
      %498 = vmatpush2.bf16.msra.mxu0 0
      %499 = vmatprep.subr.bf16.mxu0 0
      %500 = vmatpush2.bf16.msra.mxu0 0
      %501 = vmatprep.subr.bf16.mxu0 0
      %502 = vmatpush2.bf16.msra.mxu0 0
      %503 = vmatprep.mubr.bf16.mxu0 0
      %504 = vmatmul.mubr.bf16.gmra.mxu0 %v465
      %v505 = vpop.f32.mrf.mxu0
      %v506 = vadd.f32 0.0, %v505
      %v507 = vpop.f32.mrf.mxu0
      %v508 = vpop.f32.mrf.mxu0
      %v509 = vpop.f32.mrf.mxu0
      %510 = vdwg.mxu0
      %512 = vrot.lane.b32.xlu0 %v394, 120
      %v513 = vpop.permute.xlu0 %512
      %514 = vrot.lane.b32.xlu0 %v395, 120
      %v515 = vpop.permute.xlu0 %514
      %v517 = vsel %vm402, %v513, 0
      %v520 = vsel %vm402, %v515, 0
      %522 = vmatprep.subr.bf16.mxu0 0
      %523 = vmatpush1.bf16.xpose.msra.mxu0 0
      %524 = vmatprep.subr.bf16.mxu0 0
      %525 = vmatpush1.bf16.xpose.msra.mxu0 0
      %526 = vmatprep.subr.bf16.mxu0 0
      %527 = vmatpush1.bf16.xpose.msra.mxu0 0
      %528 = vmatprep.subr.bf16.mxu0 0
      %529 = vmatpush1.bf16.xpose.msra.mxu0 0
      %530 = vmatprep.subr.bf16.mxu0 0
      %531 = vmatpush1.bf16.xpose.msra.mxu0 0
      %532 = vmatprep.subr.bf16.mxu0 0
      %533 = vmatpush1.bf16.xpose.msra.mxu0 0
      %534 = vmatprep.subr.bf16.mxu0 0
      %535 = vmatpush1.bf16.xpose.msra.mxu0 0
      %536 = vmatprep.subr.bf16.mxu0 0
      %537 = vmatpush1.bf16.xpose.msra.mxu0 %v520
      %538 = vmatprep.subr.bf16.mxu0 0
      %539 = vmatpush2.bf16.xpose.msra.mxu0 0
      %540 = vmatprep.subr.bf16.mxu0 0
      %541 = vmatpush2.bf16.xpose.msra.mxu0 0
      %542 = vmatprep.subr.bf16.mxu0 0
      %543 = vmatpush2.bf16.xpose.msra.mxu0 0
      %544 = vmatprep.subr.bf16.mxu0 0
      %545 = vmatpush2.bf16.xpose.msra.mxu0 0
      %546 = vmatprep.subr.bf16.mxu0 0
      %547 = vmatpush2.bf16.xpose.msra.mxu0 0
      %548 = vmatprep.subr.bf16.mxu0 0
      %549 = vmatpush2.bf16.xpose.msra.mxu0 0
      %550 = vmatprep.subr.bf16.mxu0 0
      %551 = vmatpush2.bf16.xpose.msra.mxu0 0
      %552 = vmatprep.subr.bf16.mxu0 0
      %553 = vmatpush2.bf16.xpose.msra.mxu0 0
      %554 = vmatprep.mubr.bf16.mxu0 0
      %555 = vmatmul.mubr.bf16.gmra.mxu0 %v517
      %v556 = vpop.f32.mrf.mxu0
      %v557 = vadd.f32 %v400, %v556
      %v558 = vpop.f32.mrf.mxu0
      %v559 = vpop.f32.mrf.mxu0
      %v560 = vpop.f32.mrf.mxu0
      %561 = vdwg.mxu0
      %v562 = vsel %vm402, %v557, -inf
      %563 = vmax.xlane.f32.xlu0 %v562
      %v564 = vpop.xlane.xlu0 %563
      %v565 = vsub.f32 %v557, %v564
      %v566 = vmul.f32 %v565, 1.442695
      %v567 = vpow.pop %v566
      %v568 = vsel %vm402, %v567, 0.0
      %569 = vadd.xlane.f32.xlu0 %v568
      %v570 = vpop.xlane.xlu0 %569
      %v571 = vrcp.pop %v570
      %v572 = vmul.f32 %v567, %v571
      %v573 = vpack.c.bf16 %v572, %v572
      %574 = vrot.lane.b32.xlu0 %v395, 88
      %v575 = vpop.permute.xlu0 %574
      %v577 = vsel %vm402, %v573, 0
      %v580 = vsel %vm467, %v575, 0
      %582 = vmatprep.subr.bf16.mxu0 0
      %583 = vmatpush1.bf16.msra.mxu0 0
      %584 = vmatprep.subr.bf16.mxu0 0
      %585 = vmatpush1.bf16.msra.mxu0 0
      %586 = vmatprep.subr.bf16.mxu0 0
      %587 = vmatpush1.bf16.msra.mxu0 0
      %588 = vmatprep.subr.bf16.mxu0 0
      %589 = vmatpush1.bf16.msra.mxu0 0
      %590 = vmatprep.subr.bf16.mxu0 0
      %591 = vmatpush1.bf16.msra.mxu0 0
      %592 = vmatprep.subr.bf16.mxu0 0
      %593 = vmatpush1.bf16.msra.mxu0 0
      %594 = vmatprep.subr.bf16.mxu0 0
      %595 = vmatpush1.bf16.msra.mxu0 0
      %596 = vmatprep.subr.bf16.mxu0 0
      %597 = vmatpush1.bf16.msra.mxu0 %v580
      %598 = vmatprep.subr.bf16.mxu0 0
      %599 = vmatpush2.bf16.msra.mxu0 0
      %600 = vmatprep.subr.bf16.mxu0 0
      %601 = vmatpush2.bf16.msra.mxu0 0
      %602 = vmatprep.subr.bf16.mxu0 0
      %603 = vmatpush2.bf16.msra.mxu0 0
      %604 = vmatprep.subr.bf16.mxu0 0
      %605 = vmatpush2.bf16.msra.mxu0 0
      %606 = vmatprep.subr.bf16.mxu0 0
      %607 = vmatpush2.bf16.msra.mxu0 0
      %608 = vmatprep.subr.bf16.mxu0 0
      %609 = vmatpush2.bf16.msra.mxu0 0
      %610 = vmatprep.subr.bf16.mxu0 0
      %611 = vmatpush2.bf16.msra.mxu0 0
      %612 = vmatprep.subr.bf16.mxu0 0
      %613 = vmatpush2.bf16.msra.mxu0 0
      %614 = vmatprep.mubr.bf16.mxu0 0
      %615 = vmatmul.mubr.bf16.gmra.mxu0 %v577
      %v616 = vpop.f32.mrf.mxu0
      %v617 = vadd.f32 0.0, %v616
      %v618 = vpop.f32.mrf.mxu0
      %v619 = vpop.f32.mrf.mxu0
      %v620 = vpop.f32.mrf.mxu0
      %621 = vdwg.mxu0
      %622 = vrot.lane.b32.xlu0 %v394, 112
      %v623 = vpop.permute.xlu0 %622
      %624 = vrot.lane.b32.xlu0 %v395, 112
      %v625 = vpop.permute.xlu0 %624
      %v627 = vsel %vm402, %v623, 0
      %v630 = vsel %vm402, %v625, 0
      %632 = vmatprep.subr.bf16.mxu0 0
      %633 = vmatpush1.bf16.xpose.msra.mxu0 0
      %634 = vmatprep.subr.bf16.mxu0 0
      %635 = vmatpush1.bf16.xpose.msra.mxu0 0
      %636 = vmatprep.subr.bf16.mxu0 0
      %637 = vmatpush1.bf16.xpose.msra.mxu0 0
      %638 = vmatprep.subr.bf16.mxu0 0
      %639 = vmatpush1.bf16.xpose.msra.mxu0 0
      %640 = vmatprep.subr.bf16.mxu0 0
      %641 = vmatpush1.bf16.xpose.msra.mxu0 0
      %642 = vmatprep.subr.bf16.mxu0 0
      %643 = vmatpush1.bf16.xpose.msra.mxu0 0
      %644 = vmatprep.subr.bf16.mxu0 0
      %645 = vmatpush1.bf16.xpose.msra.mxu0 0
      %646 = vmatprep.subr.bf16.mxu0 0
      %647 = vmatpush1.bf16.xpose.msra.mxu0 %v630
      %648 = vmatprep.subr.bf16.mxu0 0
      %649 = vmatpush2.bf16.xpose.msra.mxu0 0
      %650 = vmatprep.subr.bf16.mxu0 0
      %651 = vmatpush2.bf16.xpose.msra.mxu0 0
      %652 = vmatprep.subr.bf16.mxu0 0
      %653 = vmatpush2.bf16.xpose.msra.mxu0 0
      %654 = vmatprep.subr.bf16.mxu0 0
      %655 = vmatpush2.bf16.xpose.msra.mxu0 0
      %656 = vmatprep.subr.bf16.mxu0 0
      %657 = vmatpush2.bf16.xpose.msra.mxu0 0
      %658 = vmatprep.subr.bf16.mxu0 0
      %659 = vmatpush2.bf16.xpose.msra.mxu0 0
      %660 = vmatprep.subr.bf16.mxu0 0
      %661 = vmatpush2.bf16.xpose.msra.mxu0 0
      %662 = vmatprep.subr.bf16.mxu0 0
      %663 = vmatpush2.bf16.xpose.msra.mxu0 0
      %664 = vmatprep.mubr.bf16.mxu0 0
      %665 = vmatmul.mubr.bf16.gmra.mxu0 %v627
      %v666 = vpop.f32.mrf.mxu0
      %v667 = vadd.f32 %v400, %v666
      %v668 = vpop.f32.mrf.mxu0
      %v669 = vpop.f32.mrf.mxu0
      %v670 = vpop.f32.mrf.mxu0
      %671 = vdwg.mxu0
      %v672 = vsel %vm402, %v667, -inf
      %673 = vmax.xlane.f32.xlu0 %v672
      %v674 = vpop.xlane.xlu0 %673
      %v675 = vsub.f32 %v667, %v674
      %v676 = vmul.f32 %v675, 1.442695
      %v677 = vpow.pop %v676
      %v678 = vsel %vm402, %v677, 0.0
      %679 = vadd.xlane.f32.xlu0 %v678
      %v680 = vpop.xlane.xlu0 %679
      %v681 = vrcp.pop %v680
      %v682 = vmul.f32 %v677, %v681
      %v683 = vpack.c.bf16 %v682, %v682
      %684 = vrot.lane.b32.xlu0 %v395, 80
      %v685 = vpop.permute.xlu0 %684
      %v687 = vsel %vm402, %v683, 0
      %v690 = vsel %vm467, %v685, 0
      %692 = vmatprep.subr.bf16.mxu0 0
      %693 = vmatpush1.bf16.msra.mxu0 0
      %694 = vmatprep.subr.bf16.mxu0 0
      %695 = vmatpush1.bf16.msra.mxu0 0
      %696 = vmatprep.subr.bf16.mxu0 0
      %697 = vmatpush1.bf16.msra.mxu0 0
      %698 = vmatprep.subr.bf16.mxu0 0
      %699 = vmatpush1.bf16.msra.mxu0 0
      %700 = vmatprep.subr.bf16.mxu0 0
      %701 = vmatpush1.bf16.msra.mxu0 0
      %702 = vmatprep.subr.bf16.mxu0 0
      %703 = vmatpush1.bf16.msra.mxu0 0
      %704 = vmatprep.subr.bf16.mxu0 0
      %705 = vmatpush1.bf16.msra.mxu0 0
      %706 = vmatprep.subr.bf16.mxu0 0
      %707 = vmatpush1.bf16.msra.mxu0 %v690
      %708 = vmatprep.subr.bf16.mxu0 0
      %709 = vmatpush2.bf16.msra.mxu0 0
      %710 = vmatprep.subr.bf16.mxu0 0
      %711 = vmatpush2.bf16.msra.mxu0 0
      %712 = vmatprep.subr.bf16.mxu0 0
      %713 = vmatpush2.bf16.msra.mxu0 0
      %714 = vmatprep.subr.bf16.mxu0 0
      %715 = vmatpush2.bf16.msra.mxu0 0
      %716 = vmatprep.subr.bf16.mxu0 0
      %717 = vmatpush2.bf16.msra.mxu0 0
      %718 = vmatprep.subr.bf16.mxu0 0
      %719 = vmatpush2.bf16.msra.mxu0 0
      %720 = vmatprep.subr.bf16.mxu0 0
      %721 = vmatpush2.bf16.msra.mxu0 0
      %722 = vmatprep.subr.bf16.mxu0 0
      %723 = vmatpush2.bf16.msra.mxu0 0
      %724 = vmatprep.mubr.bf16.mxu0 0
      %725 = vmatmul.mubr.bf16.gmra.mxu0 %v687
      %v726 = vpop.f32.mrf.mxu0
      %v727 = vadd.f32 0.0, %v726
      %v728 = vpop.f32.mrf.mxu0
      %v729 = vpop.f32.mrf.mxu0
      %v730 = vpop.f32.mrf.mxu0
      %731 = vdwg.mxu0
      %732 = vrot.lane.b32.xlu0 %v394, 104
      %v733 = vpop.permute.xlu0 %732
      %734 = vrot.lane.b32.xlu0 %v395, 104
      %v735 = vpop.permute.xlu0 %734
      %v737 = vsel %vm402, %v733, 0
      %v740 = vsel %vm402, %v735, 0
      %742 = vmatprep.subr.bf16.mxu0 0
      %743 = vmatpush1.bf16.xpose.msra.mxu0 0
      %744 = vmatprep.subr.bf16.mxu0 0
      %745 = vmatpush1.bf16.xpose.msra.mxu0 0
      %746 = vmatprep.subr.bf16.mxu0 0
      %747 = vmatpush1.bf16.xpose.msra.mxu0 0
      %748 = vmatprep.subr.bf16.mxu0 0
      %749 = vmatpush1.bf16.xpose.msra.mxu0 0
      %750 = vmatprep.subr.bf16.mxu0 0
      %751 = vmatpush1.bf16.xpose.msra.mxu0 0
      %752 = vmatprep.subr.bf16.mxu0 0
      %753 = vmatpush1.bf16.xpose.msra.mxu0 0
      %754 = vmatprep.subr.bf16.mxu0 0
      %755 = vmatpush1.bf16.xpose.msra.mxu0 0
      %756 = vmatprep.subr.bf16.mxu0 0
      %757 = vmatpush1.bf16.xpose.msra.mxu0 %v740
      %758 = vmatprep.subr.bf16.mxu0 0
      %759 = vmatpush2.bf16.xpose.msra.mxu0 0
      %760 = vmatprep.subr.bf16.mxu0 0
      %761 = vmatpush2.bf16.xpose.msra.mxu0 0
      %762 = vmatprep.subr.bf16.mxu0 0
      %763 = vmatpush2.bf16.xpose.msra.mxu0 0
      %764 = vmatprep.subr.bf16.mxu0 0
      %765 = vmatpush2.bf16.xpose.msra.mxu0 0
      %766 = vmatprep.subr.bf16.mxu0 0
      %767 = vmatpush2.bf16.xpose.msra.mxu0 0
      %768 = vmatprep.subr.bf16.mxu0 0
      %769 = vmatpush2.bf16.xpose.msra.mxu0 0
      %770 = vmatprep.subr.bf16.mxu0 0
      %771 = vmatpush2.bf16.xpose.msra.mxu0 0
      %772 = vmatprep.subr.bf16.mxu0 0
      %773 = vmatpush2.bf16.xpose.msra.mxu0 0
      %774 = vmatprep.mubr.bf16.mxu0 0
      %775 = vmatmul.mubr.bf16.gmra.mxu0 %v737
      %v776 = vpop.f32.mrf.mxu0
      %v777 = vadd.f32 %v400, %v776
      %v778 = vpop.f32.mrf.mxu0
      %v779 = vpop.f32.mrf.mxu0
      %v780 = vpop.f32.mrf.mxu0
      %781 = vdwg.mxu0
      %v782 = vsel %vm402, %v777, -inf
      %783 = vmax.xlane.f32.xlu0 %v782
      %v784 = vpop.xlane.xlu0 %783
      %v785 = vsub.f32 %v777, %v784
      %v786 = vmul.f32 %v785, 1.442695
      %v787 = vpow.pop %v786
      %v788 = vsel %vm402, %v787, 0.0
      %789 = vadd.xlane.f32.xlu0 %v788
      %v790 = vpop.xlane.xlu0 %789
      %v791 = vrcp.pop %v790
      %v792 = vmul.f32 %v787, %v791
      %v793 = vpack.c.bf16 %v792, %v792
      %794 = vrot.lane.b32.xlu0 %v395, 72
      %v795 = vpop.permute.xlu0 %794
      %v797 = vsel %vm402, %v793, 0
      %v800 = vsel %vm467, %v795, 0
      %802 = vmatprep.subr.bf16.mxu0 0
      %803 = vmatpush1.bf16.msra.mxu0 0
      %804 = vmatprep.subr.bf16.mxu0 0
      %805 = vmatpush1.bf16.msra.mxu0 0
      %806 = vmatprep.subr.bf16.mxu0 0
      %807 = vmatpush1.bf16.msra.mxu0 0
      %808 = vmatprep.subr.bf16.mxu0 0
      %809 = vmatpush1.bf16.msra.mxu0 0
      %810 = vmatprep.subr.bf16.mxu0 0
      %811 = vmatpush1.bf16.msra.mxu0 0
      %812 = vmatprep.subr.bf16.mxu0 0
      %813 = vmatpush1.bf16.msra.mxu0 0
      %814 = vmatprep.subr.bf16.mxu0 0
      %815 = vmatpush1.bf16.msra.mxu0 0
      %816 = vmatprep.subr.bf16.mxu0 0
      %817 = vmatpush1.bf16.msra.mxu0 %v800
      %818 = vmatprep.subr.bf16.mxu0 0
      %819 = vmatpush2.bf16.msra.mxu0 0
      %820 = vmatprep.subr.bf16.mxu0 0
      %821 = vmatpush2.bf16.msra.mxu0 0
      %822 = vmatprep.subr.bf16.mxu0 0
      %823 = vmatpush2.bf16.msra.mxu0 0
      %824 = vmatprep.subr.bf16.mxu0 0
      %825 = vmatpush2.bf16.msra.mxu0 0
      %826 = vmatprep.subr.bf16.mxu0 0
      %827 = vmatpush2.bf16.msra.mxu0 0
      %828 = vmatprep.subr.bf16.mxu0 0
      %829 = vmatpush2.bf16.msra.mxu0 0
      %830 = vmatprep.subr.bf16.mxu0 0
      %831 = vmatpush2.bf16.msra.mxu0 0
      %832 = vmatprep.subr.bf16.mxu0 0
      %833 = vmatpush2.bf16.msra.mxu0 0
      %834 = vmatprep.mubr.bf16.mxu0 0
      %835 = vmatmul.mubr.bf16.gmra.mxu0 %v797
      %v836 = vpop.f32.mrf.mxu0
      %v837 = vadd.f32 0.0, %v836
      %v838 = vpop.f32.mrf.mxu0
      %v839 = vpop.f32.mrf.mxu0
      %v840 = vpop.f32.mrf.mxu0
      %841 = vdwg.mxu0
      %843 = vrot.lane.b32.xlu0 %v617, 8
      %v844 = vpop.permute.xlu0 %843
      %847 = vrot.lane.b32.xlu0 %v727, 16
      %v848 = vpop.permute.xlu0 %847
      %851 = vrot.lane.b32.xlu0 %v837, 24
      %v852 = vpop.permute.xlu0 %851
      %v854 = vsel %vm402, %v506, %v844
      %vm855 = vcmask 130048
      %v856 = vsel %vm855, %v854, %v848
      %vm857 = vcmask 195584
      %v858 = vsel %vm857, %v856, %v852
      %859 = vst.msk [vmem:[%s260] sm:$0xff] %vm287, %v858
      %p860 = scmp.lt.s32.totalorder %s17, 1
      %s861 = scalar_select %p860, %s17, 1
      %s862 = smul.addr %s861, 8
      %s863 = scalar_lea.vmem %s6, %s862
      // Predicated region
      $region45: #{run.4} parent=43 // pred_check
        %p864 = pneg %p171
      $region46: #{run.4} parent=43 // pred_check_branch
        %866 = sbr.rel (%p864) target = $region48
      $region47: #{run.4} parent=43 // pred_region
        _
      $region48: #{run.4} parent=43 // pred_fallthru
        _
    $region44: #{run.4} parent=5 // pred_fallthru
      _
    %p867 = scmp.le.s32.totalorder 2, %s12
    // Predicated region
    $region49: #{run.4} parent=5 // pred_check
      %p868 = pneg %p867
    $region50: #{run.4} parent=5 // pred_check_branch
      %870 = sbr.rel (%p868) target = $region52
    $region51: #{run.4} parent=5 // pred_region
      %s871 = ssub.s32 %s12, 2
      // Predicated region
      $region53: #{run.4} parent=51 // pred_check
        %p872 = pneg %p177
      $region54: #{run.4} parent=51 // pred_check_branch
        %874 = sbr.rel (%p872) target = $region56
      $region55: #{run.4} parent=51 // pred_region
        %p875 = scmp.lt.s32.totalorder %s18, 1
        %s876 = scalar_select %p875, %s18, 1
        %s877 = smul.addr %s876, 8
        %s878 = scalar_lea.vmem %s6, %s877
      $region56: #{run.4} parent=51 // pred_fallthru
        _
    $region52: #{run.4} parent=5 // pred_fallthru
      _
  $region6: #{run.4} parent=0 // loop_footer
    %s16 = sadd.s32 1, %s12
  $region7: #{run.4} parent=0 // loop_footer_branch
    %11 = sbr.rel target = $region3
  $region8: #{run.4} parent=0 // loop_exit
    _

</llo_original>
